<compile_context>
chip_gen: v5e
topology: v5e:2x2
jax: 0.10.0
libtpu: 0.0.40
codegen_flags: <defaults>
</compile_context>

<pallas_src>
import functools

import jax
import jax.numpy as jnp
import numpy as np
from jax.experimental import pallas as pl
from jax.experimental.pallas import tpu as pltpu


def _round_up(x, m):
    return ((x + m - 1) // m) * m


def _hidden_lane_target():
    """256 on 256-wide-MXU chips (v6e/v7x); 128 on older 128-wide MXUs."""
    try:
        kind = jax.devices()[0].device_kind.lower()
        if any(g in kind for g in ("v2", "v3", "v4", "v5")):
            return 128
    except Exception:  # pragma: no cover - conservative fallback
        pass
    return 256


def _mlp_kernel(x_ref, w_in_ref, b_in_ref, w_h_ref, b_h_ref,
                w_out_ref, b_out_ref, o_ref, *, num_hidden):
    # Input linear: bf16 operands on the MXU, f32 accumulation.
    y = jnp.dot(x_ref[...], w_in_ref[...],
                preferred_element_type=jnp.float32) + b_in_ref[...]

    # Hidden layers (statically unrolled; dropout == identity at inference).
    for h in range(num_hidden):
        y = jnp.maximum(y, 0.0).astype(jnp.bfloat16)      # ReLU (f32) -> bf16
        y = jnp.dot(y, w_h_ref[h],
                    preferred_element_type=jnp.float32) + b_h_ref[h:h + 1, :]

    # Output layer + sigmoid.  exp and approx-reciprocal both go to the EUP,
    # which is otherwise idle under this MXU-bound kernel.
    y = jnp.maximum(y, 0.0).astype(jnp.bfloat16)
    logits = jnp.dot(y, w_out_ref[...],
                     preferred_element_type=jnp.float32) + b_out_ref[...]
    sig = pl.reciprocal(1.0 + jnp.exp(-logits), approx=True)
    o_ref[...] = sig.astype(o_ref.dtype)


def pack_params(w_in, b_in, w_h, b_h, w_out, b_out, *, lane_target=None):
    """One-time weight packing (do at model-load time, NOT per inference call).

    Casts matmul operands to bf16, pads the hidden dim to the MXU lane target
    (256 on v6e/v7x) and the class dim to 128 lanes.  Padding lanes are zero,
    ReLU keeps them zero, and zero weight rows contribute nothing, so the
    numerics of the unpadded slice are unchanged.
    """
    if lane_target is None:
        lane_target = _hidden_lane_target()

    F_in, L = int(w_in.shape[0]), int(w_in.shape[1])
    C = int(w_out.shape[1])
    H = 0 if w_h is None else int(w_h.shape[0])

    L_pad = max(_round_up(L, 128), lane_target)
    C_pad = _round_up(C, 128)

    w_in_p = jnp.zeros((F_in, L_pad), jnp.bfloat16).at[:, :L].set(
        w_in.astype(jnp.bfloat16))
    b_in_p = jnp.zeros((1, L_pad), jnp.float32).at[0, :L].set(
        b_in.astype(jnp.float32))

    if H == 0:
        # Degenerate num_layers == 1: dummy hidden stack, looped zero times.
        w_h_p = jnp.zeros((1, L_pad, L_pad), jnp.bfloat16)
        b_h_p = jnp.zeros((1, L_pad), jnp.float32)
    else:
        w_h_p = jnp.zeros((H, L_pad, L_pad), jnp.bfloat16).at[:, :L, :L].set(
            w_h.astype(jnp.bfloat16))
        b_h_p = jnp.zeros((H, L_pad), jnp.float32).at[:, :L].set(
            b_h.astype(jnp.float32))

    w_out_p = jnp.zeros((L_pad, C_pad), jnp.bfloat16).at[:L, :C].set(
        w_out.astype(jnp.bfloat16))
    b_out_p = jnp.zeros((1, C_pad), jnp.float32).at[0, :C].set(
        b_out.astype(jnp.float32))

    meta = {"num_hidden": H, "n_classes": C}
    return (w_in_p, b_in_p, w_h_p, b_h_p, w_out_p, b_out_p), meta


@functools.partial(jax.jit,
                   static_argnames=("num_hidden", "n_classes", "block_m"))
def basic_mlp_forward(x, w_in_p, b_in_p, w_h_p, b_h_p, w_out_p, b_out_p, *,
                      num_hidden, n_classes, block_m=512):
    """JAX/Pallas equivalent of BasicMLPNN.forward (inference) on packed params."""
    B, F_in = x.shape
    L_pad = int(w_in_p.shape[1])
    C_pad = int(w_out_p.shape[1])
    H_blk = int(w_h_p.shape[0])

    # Batch tile: multiple of 16 (bf16 sublane packing), as large as block_m
    # allows; for small batches halve it so the grid has >= 2 steps (keeps
    # both TensorCores busy on v7x megacore).
    tm = min(block_m, _round_up(B, 16))
    if _round_up(B, tm) // tm < 2 and tm > 16:
        tm = max(16, _round_up(tm // 2, 16))
    B_pad = _round_up(B, tm)

    x_p = x.astype(jnp.bfloat16)
    if B_pad != B:
        x_p = jnp.pad(x_p, ((0, B_pad - B), (0, 0)))

    kernel = functools.partial(_mlp_kernel, num_hidden=num_hidden)

    # Weights/biases never change block index -> single VMEM buffer is enough.
    resident = dict(pipeline_mode=pl.Buffered(1))

    out = pl.pallas_call(
        kernel,
        out_shape=jax.ShapeDtypeStruct((B_pad, C_pad), jnp.float32),
        grid_spec=pltpu.PrefetchScalarGridSpec(
            num_scalar_prefetch=0,
            grid=(B_pad // tm,),
            in_specs=[
                pl.BlockSpec((tm, F_in), lambda i: (i, 0)),        # x batch tile
                pl.BlockSpec((F_in, L_pad), lambda i: (0, 0), **resident),
                pl.BlockSpec((1, L_pad), lambda i: (0, 0), **resident),
                pl.BlockSpec((H_blk, L_pad, L_pad),
                             lambda i: (0, 0, 0), **resident),
                pl.BlockSpec((H_blk, L_pad), lambda i: (0, 0), **resident),
                pl.BlockSpec((L_pad, C_pad), lambda i: (0, 0), **resident),
                pl.BlockSpec((1, C_pad), lambda i: (0, 0), **resident),
            ],
            out_specs=pl.BlockSpec((tm, C_pad), lambda i: (i, 0)),
        ),
        compiler_params=pltpu.CompilerParams(
            dimension_semantics=("parallel",),
            vmem_limit_bytes=48 * 1024 * 1024,
        ),
    )(x_p, w_in_p, b_in_p, w_h_p, b_h_p, w_out_p, b_out_p)

    return out[:B, :n_classes]


if __name__ == "__main__":
    key = jax.random.PRNGKey(0)
    keys = jax.random.split(key, 7)

    # Small, TPU-friendly config (module defaults 4096/256/4/2 scaled down).
    batch = 64
    input_ftrs = 256
    layer_size = 128
    num_layers = 4           # 1 input linear + 3 hidden linears + output linear
    n_classes = 2
    n_hidden = num_layers - 1

    scale = 0.05
    x = jax.random.normal(keys[0], (batch, input_ftrs), jnp.float32)
    w_in = jax.random.normal(keys[1], (input_ftrs, layer_size), jnp.float32) * scale
    b_in = jax.random.normal(keys[2], (layer_size,), jnp.float32) * scale
    w_h = jax.random.normal(keys[3], (n_hidden, layer_size, layer_size), jnp.float32) * scale
    b_h = jax.random.normal(keys[4], (n_hidden, layer_size), jnp.float32) * scale
    w_out = jax.random.normal(keys[5], (layer_size, n_classes), jnp.float32) * scale
    b_out = jax.random.normal(keys[6], (n_classes,), jnp.float32) * scale

    # Pack once at "model load" time (bf16 cast + lane padding).
    packed, meta = pack_params(w_in, b_in, w_h, b_h, w_out, b_out)

    out = basic_mlp_forward(x, *packed,
                            num_hidden=meta["num_hidden"],
                            n_classes=meta["n_classes"])
    out = jax.block_until_ready(out)

    # Pure-JAX f32 reference (dropout = identity: p=0.0 / eval mode).
    y = x @ w_in + b_in
    for h in range(n_hidden):
        y = jnp.maximum(y, 0.0)
        y = y @ w_h[h] + b_h[h]
    y = jnp.maximum(y, 0.0)
    ref = jax.nn.sigmoid(y @ w_out + b_out)

    # bf16 matmul operands + approx reciprocal => relax tolerance vs f32 ref.
    np.testing.assert_allclose(np.asarray(out), np.asarray(ref),
                               rtol=2e-2, atol=2e-2)
    assert out.shape == (batch, n_classes)
    print("KERNEL_OK")
</pallas_src>

<mosaic_0001>
module attributes {stable_mosaic.version = 11 : i64} {
  func.func @_mlp_kernel(%arg0: i32, %arg1: memref<32x256xbf16, #tpu.memory_space<vmem>>, %arg2: memref<256x256xbf16, #tpu.memory_space<vmem>>, %arg3: memref<1x256xf32, #tpu.memory_space<vmem>>, %arg4: memref<3x256x256xbf16, #tpu.memory_space<vmem>>, %arg5: memref<3x256xf32, #tpu.memory_space<vmem>>, %arg6: memref<256x128xbf16, #tpu.memory_space<vmem>>, %arg7: memref<1x128xf32, #tpu.memory_space<vmem>>, %arg8: memref<32x128xf32, #tpu.memory_space<vmem>>) attributes {dimension_semantics = [#tpu.dimension_semantics<parallel>], iteration_bounds = array<i64: 2>, scalar_prefetch = 0 : i64, scratch_operands = 0 : i64, tpu.core_type = #tpu.core_type<tc>, window_params = [{transform_indices = @transform_0, window_bounds = array<i64: 32, 256>}, {pipeline_mode = #tpu.pipeline_mode<synchronous>, transform_indices = @transform_1, window_bounds = array<i64: 256, 256>}, {pipeline_mode = #tpu.pipeline_mode<synchronous>, transform_indices = @transform_2, window_bounds = array<i64: 1, 256>}, {pipeline_mode = #tpu.pipeline_mode<synchronous>, transform_indices = @transform_3, window_bounds = array<i64: 3, 256, 256>}, {pipeline_mode = #tpu.pipeline_mode<synchronous>, transform_indices = @transform_4, window_bounds = array<i64: 3, 256>}, {pipeline_mode = #tpu.pipeline_mode<synchronous>, transform_indices = @transform_5, window_bounds = array<i64: 256, 128>}, {pipeline_mode = #tpu.pipeline_mode<synchronous>, transform_indices = @transform_6, window_bounds = array<i64: 1, 128>}, {transform_indices = @transform_7, window_bounds = array<i64: 32, 128>}]} {
    %c0 = arith.constant 0 : index
    %c0_0 = arith.constant 0 : index
    %0 = vector.load %arg1[%c0, %c0_0] : memref<32x256xbf16, #tpu.memory_space<vmem>>, vector<32x256xbf16>
    %c0_1 = arith.constant 0 : index
    %c0_2 = arith.constant 0 : index
    %1 = vector.load %arg2[%c0_1, %c0_2] : memref<256x256xbf16, #tpu.memory_space<vmem>>, vector<256x256xbf16>
    %cst = arith.constant dense<0.000000e+00> : vector<32x256xf32>
    %2 = tpu.matmul %0, %1, %cst {dimension_numbers = #tpu.dot_dimension_numbers<[1], [0], [0], [1], [0, 0, 1, 1], [], []>} : vector<32x256xbf16>, vector<256x256xbf16>, vector<32x256xf32> -> vector<32x256xf32>
    %c0_3 = arith.constant 0 : index
    %c0_4 = arith.constant 0 : index
    %3 = vector.load %arg3[%c0_3, %c0_4] : memref<1x256xf32, #tpu.memory_space<vmem>>, vector<1x256xf32>
    %4 = vector.broadcast %3 : vector<1x256xf32> to vector<32x256xf32>
    %5 = arith.addf %2, %4 : vector<32x256xf32>
    %cst_5 = arith.constant 0.000000e+00 : f32
    %6 = vector.broadcast %cst_5 : f32 to vector<32x256xf32>
    %7 = arith.maximumf %5, %6 : vector<32x256xf32>
    %8 = arith.truncf %7 : vector<32x256xf32> to vector<32x256xbf16>
    %c0_6 = arith.constant 0 : index
    %c0_7 = arith.constant 0 : index
    %c0_8 = arith.constant 0 : index
    %9 = vector.load %arg4[%c0_6, %c0_7, %c0_8] : memref<3x256x256xbf16, #tpu.memory_space<vmem>>, vector<1x256x256xbf16>
    %10 = vector.shape_cast %9 : vector<1x256x256xbf16> to vector<256x256xbf16>
    %cst_9 = arith.constant dense<0.000000e+00> : vector<32x256xf32>
    %11 = tpu.matmul %8, %10, %cst_9 {dimension_numbers = #tpu.dot_dimension_numbers<[1], [0], [0], [1], [0, 0, 1, 1], [], []>} : vector<32x256xbf16>, vector<256x256xbf16>, vector<32x256xf32> -> vector<32x256xf32>
    %c0_10 = arith.constant 0 : index
    %c0_11 = arith.constant 0 : index
    %12 = vector.load %arg5[%c0_10, %c0_11] : memref<3x256xf32, #tpu.memory_space<vmem>>, vector<1x256xf32>
    %13 = vector.broadcast %12 : vector<1x256xf32> to vector<32x256xf32>
    %14 = arith.addf %11, %13 : vector<32x256xf32>
    %cst_12 = arith.constant 0.000000e+00 : f32
    %15 = vector.broadcast %cst_12 : f32 to vector<32x256xf32>
    %16 = arith.maximumf %14, %15 : vector<32x256xf32>
    %17 = arith.truncf %16 : vector<32x256xf32> to vector<32x256xbf16>
    %c1 = arith.constant 1 : index
    %c0_13 = arith.constant 0 : index
    %c0_14 = arith.constant 0 : index
    %18 = vector.load %arg4[%c1, %c0_13, %c0_14] : memref<3x256x256xbf16, #tpu.memory_space<vmem>>, vector<1x256x256xbf16>
    %19 = vector.shape_cast %18 : vector<1x256x256xbf16> to vector<256x256xbf16>
    %cst_15 = arith.constant dense<0.000000e+00> : vector<32x256xf32>
    %20 = tpu.matmul %17, %19, %cst_15 {dimension_numbers = #tpu.dot_dimension_numbers<[1], [0], [0], [1], [0, 0, 1, 1], [], []>} : vector<32x256xbf16>, vector<256x256xbf16>, vector<32x256xf32> -> vector<32x256xf32>
    %c1_16 = arith.constant 1 : index
    %c0_17 = arith.constant 0 : index
    %21 = vector.load %arg5[%c1_16, %c0_17] : memref<3x256xf32, #tpu.memory_space<vmem>>, vector<1x256xf32>
    %22 = vector.broadcast %21 : vector<1x256xf32> to vector<32x256xf32>
    %23 = arith.addf %20, %22 : vector<32x256xf32>
    %cst_18 = arith.constant 0.000000e+00 : f32
    %24 = vector.broadcast %cst_18 : f32 to vector<32x256xf32>
    %25 = arith.maximumf %23, %24 : vector<32x256xf32>
    %26 = arith.truncf %25 : vector<32x256xf32> to vector<32x256xbf16>
    %c2 = arith.constant 2 : index
    %c0_19 = arith.constant 0 : index
    %c0_20 = arith.constant 0 : index
    %27 = vector.load %arg4[%c2, %c0_19, %c0_20] : memref<3x256x256xbf16, #tpu.memory_space<vmem>>, vector<1x256x256xbf16>
    %28 = vector.shape_cast %27 : vector<1x256x256xbf16> to vector<256x256xbf16>
    %cst_21 = arith.constant dense<0.000000e+00> : vector<32x256xf32>
    %29 = tpu.matmul %26, %28, %cst_21 {dimension_numbers = #tpu.dot_dimension_numbers<[1], [0], [0], [1], [0, 0, 1, 1], [], []>} : vector<32x256xbf16>, vector<256x256xbf16>, vector<32x256xf32> -> vector<32x256xf32>
    %c2_22 = arith.constant 2 : index
    %c0_23 = arith.constant 0 : index
    %30 = vector.load %arg5[%c2_22, %c0_23] : memref<3x256xf32, #tpu.memory_space<vmem>>, vector<1x256xf32>
    %31 = vector.broadcast %30 : vector<1x256xf32> to vector<32x256xf32>
    %32 = arith.addf %29, %31 : vector<32x256xf32>
    %cst_24 = arith.constant 0.000000e+00 : f32
    %33 = vector.broadcast %cst_24 : f32 to vector<32x256xf32>
    %34 = arith.maximumf %32, %33 : vector<32x256xf32>
    %35 = arith.truncf %34 : vector<32x256xf32> to vector<32x256xbf16>
    %c0_25 = arith.constant 0 : index
    %c0_26 = arith.constant 0 : index
    %36 = vector.load %arg6[%c0_25, %c0_26] : memref<256x128xbf16, #tpu.memory_space<vmem>>, vector<256x128xbf16>
    %cst_27 = arith.constant dense<0.000000e+00> : vector<32x128xf32>
    %37 = tpu.matmul %35, %36, %cst_27 {dimension_numbers = #tpu.dot_dimension_numbers<[1], [0], [0], [1], [0, 0, 1, 1], [], []>} : vector<32x256xbf16>, vector<256x128xbf16>, vector<32x128xf32> -> vector<32x128xf32>
    %c0_28 = arith.constant 0 : index
    %c0_29 = arith.constant 0 : index
    %38 = vector.load %arg7[%c0_28, %c0_29] : memref<1x128xf32, #tpu.memory_space<vmem>>, vector<1x128xf32>
    %39 = vector.broadcast %38 : vector<1x128xf32> to vector<32x128xf32>
    %40 = arith.addf %37, %39 : vector<32x128xf32>
    %cst_30 = arith.constant 0.000000e+00 : f32
    %41 = vector.broadcast %cst_30 : f32 to vector<32x128xf32>
    %42 = arith.subf %41, %40 : vector<32x128xf32>
    %43 = math.exp %42 : vector<32x128xf32>
    %cst_31 = arith.constant 1.000000e+00 : f32
    %44 = vector.broadcast %cst_31 : f32 to vector<32x128xf32>
    %45 = arith.addf %44, %43 : vector<32x128xf32>
    %46 = tpu.reciprocal %45 {approx = true} : vector<32x128xf32> -> vector<32x128xf32>
    %c0_32 = arith.constant 0 : index
    %c0_33 = arith.constant 0 : index
    %47 = vector.load %arg8[%c0_32, %c0_33] : memref<32x128xf32, #tpu.memory_space<vmem>>, vector<32x128xf32>
    tpu.vector_store %arg8[%c0_32, %c0_33], %46 {strides = array<i32>} : memref<32x128xf32, #tpu.memory_space<vmem>>, vector<32x128xf32>,
    return
  }
  func.func @transform_0(%arg0: i32) -> (i32, i32) {
    %c0_i32 = arith.constant 0 : i32
    %c0_i32_0 = arith.constant 0 : i32
    return %arg0, %c0_i32 : i32, i32
  }
  func.func @transform_1(%arg0: i32) -> (i32, i32) {
    %c0_i32 = arith.constant 0 : i32
    %c0_i32_0 = arith.constant 0 : i32
    %c0_i32_1 = arith.constant 0 : i32
    return %c0_i32, %c0_i32_0 : i32, i32
  }
  func.func @transform_2(%arg0: i32) -> (i32, i32) {
    %c0_i32 = arith.constant 0 : i32
    %c0_i32_0 = arith.constant 0 : i32
    %c0_i32_1 = arith.constant 0 : i32
    return %c0_i32, %c0_i32_0 : i32, i32
  }
  func.func @transform_3(%arg0: i32) -> (i32, i32, i32) {
    %c0_i32 = arith.constant 0 : i32
    %c0_i32_0 = arith.constant 0 : i32
    %c0_i32_1 = arith.constant 0 : i32
    %c0_i32_2 = arith.constant 0 : i32
    return %c0_i32, %c0_i32_0, %c0_i32_1 : i32, i32, i32
  }
  func.func @transform_4(%arg0: i32) -> (i32, i32) {
    %c0_i32 = arith.constant 0 : i32
    %c0_i32_0 = arith.constant 0 : i32
    %c0_i32_1 = arith.constant 0 : i32
    return %c0_i32, %c0_i32_0 : i32, i32
  }
  func.func @transform_5(%arg0: i32) -> (i32, i32) {
    %c0_i32 = arith.constant 0 : i32
    %c0_i32_0 = arith.constant 0 : i32
    %c0_i32_1 = arith.constant 0 : i32
    return %c0_i32, %c0_i32_0 : i32, i32
  }
  func.func @transform_6(%arg0: i32) -> (i32, i32) {
    %c0_i32 = arith.constant 0 : i32
    %c0_i32_0 = arith.constant 0 : i32
    %c0_i32_1 = arith.constant 0 : i32
    return %c0_i32, %c0_i32_0 : i32, i32
  }
  func.func @transform_7(%arg0: i32) -> (i32, i32) {
    %c0_i32 = arith.constant 0 : i32
    %c0_i32_0 = arith.constant 0 : i32
    return %arg0, %c0_i32 : i32, i32
  }
}

</mosaic_0001>

<llo_original>
// kernel: basic_mlp_forward.1
$region0: #{basic_mlp_forward.1}
  #allocation0 [shape = 'u32[]', space=smem, size = 0x4, offset = 0x4, fixed_abs, tag = 'smem constant byte address 0x4 - core index']
  #allocation1 [shape = 'u32[72,128]{1,0:T(1,128)}', space=vmem, size = 0x9000, scoped, tag = 'internal scratch']
  %s0 = inlined_call_operand.vmem [shape: bf16[64,256], index: 0, kind: input, shape index: {}]
  %s1 = inlined_call_operand.hbm [shape: bf16[256,256], index: 1, kind: input, shape index: {}]
  %s2 = inlined_call_operand.vmem [shape: f32[1,256], index: 2, kind: input, shape index: {}]
  %s3 = inlined_call_operand.hbm [shape: bf16[3,256,256], index: 3, kind: input, shape index: {}]
  %s4 = inlined_call_operand.vmem [shape: f32[3,256], index: 4, kind: input, shape index: {}]
  %s5 = inlined_call_operand.vmem [shape: bf16[256,128], index: 5, kind: input, shape index: {}]
  %s6 = inlined_call_operand.vmem [shape: f32[1,128], index: 6, kind: input, shape index: {}]
  %s7 = inlined_call_operand.vmem [shape: f32[64,128], index: 7, kind: output, shape index: {}]
  %s8 = sld [smem:[#allocation0]]
  $region69: #{basic_mlp_forward.1} parent=0
    _
  %s10 = ssub.s32 1, %s8
  %s11 = scalar_select 0, %s10, %s8
  $region1: #{basic_mlp_forward.1} parent=0
    #allocation2 [shape = 'u8[131072]{0}', space=vmem, size = 0x20000, scoped, tag = 'input window, operand 1, single buffered']
    #allocation3 [shape = 's32[2]{0}', space=sflag, size = 0x8, scoped, tag = 'scoped memory for basic_mlp_forward.1']
    #allocation4 [shape = 'u8[393216]{0}', space=vmem, size = 0x60000, scoped, tag = 'input window, operand 3, single buffered']
    #allocation5 [shape = 's32[1]{0}', space=sflag, size = 0x4, scoped, tag = 'scoped memory for basic_mlp_forward.1']
    %12 = vsyncpa [#allocation3], 0
    %13 = vsyncpa [#allocation5], 0
    loop: start=0, step=1, limit=4
    $region2: #{basic_mlp_forward.1} parent=1 // loop_pre_header
      _
    $region3: #{basic_mlp_forward.1} parent=1 // loop_header
      %s15 = sphi 0, %s19
      %p16 = scmp.ge.s32.totalorder %s15, 4
      %s25 = sphi 0, %s27
      %s28 = sphi 0, %s25
      %s29 = sphi 0, %s28
      %s45 = sphi 0, %s29
      %s49 = sphi 0, %s49
      %s51 = sphi 0, %s49
      %s52 = sphi 0, %s51
      %s66 = sphi 0, %s52
      %s70 = sphi 0, %s70
      %s72 = sphi 0, %s70
      %s73 = sphi 0, %s72
      %s87 = sphi 0, %s73
      %s91 = sphi 0, %s91
      %s93 = sphi 0, %s91
      %s94 = sphi 0, %s93
      %s108 = sphi 0, %s94
      %s112 = sphi 0, %s112
      %s114 = sphi 0, %s112
      %s115 = sphi 0, %s114
      %s129 = sphi 0, %s115
      %s133 = sphi 0, %s133
      %s135 = sphi 0, %s133
      %s136 = sphi 0, %s135
      %s150 = sphi 0, %s136
      %s154 = sphi 0, %s154
      %s156 = sphi 0, %s154
      %s157 = sphi 0, %s156
      %s171 = sphi 0, %s157
      %s177 = sphi 0, %s179
      %s180 = sphi 0, %s177
      %s181 = sphi 0, %s180
      %s197 = sphi 0, %s181
    $region4: #{basic_mlp_forward.1} parent=1 // loop_header_branch
      %18 = sbr.rel (%p16) target = $region8
    $region5: #{basic_mlp_forward.1} parent=1 // loop_body
      %s20 = ssub.s32 %s15, 1
      %s21 = ssub.s32 %s15, 2
      %s22 = sadd.s32 %s15, 1
      %s23 = ssub.s32 %s15, %s22
      %p24 = scmp.eq.s32.totalorder %s23, 0
      %s26 = sadd.s32 %s25, 1
      %s27 = scalar_select %p24, %s25, %s26
      %p30 = pneg %p24
      %p31 = scmp.eq.s32.totalorder %s15, 1
      %p32 = por %p30, %p31
      %p33 = scmp.ne.s32.totalorder %s25, %s28
      %p34 = scmp.eq.s32.totalorder %s15, 0
      %p35 = por %p33, %p34
      %p36 = scmp.ne.s32.totalorder %s25, %s28
      %p37 = scmp.eq.s32.totalorder %s20, 1
      %p38 = por %p36, %p37
      %p39 = scmp.ne.s32.totalorder %s28, %s29
      %p40 = scmp.eq.s32.totalorder %s20, 0
      %p41 = por %p39, %p40
      %p42 = scmp.ne.s32.totalorder %s28, %s29
      %p43 = scmp.eq.s32.totalorder %s21, 1
      %p44 = por %p42, %p43
      %p46 = scmp.ne.s32.totalorder %s29, %s45
      %p47 = scmp.eq.s32.totalorder %s21, 0
      %p48 = por %p46, %p47
      %s50 = sadd.s32 %s49, 1
      %p53 = scmp.eq.s32.totalorder %s15, 1
      %p54 = scmp.ne.s32.totalorder %s49, %s51
      %p55 = scmp.eq.s32.totalorder %s15, 0
      %p56 = por %p54, %p55
      %p57 = scmp.ne.s32.totalorder %s49, %s51
      %p58 = scmp.eq.s32.totalorder %s20, 1
      %p59 = por %p57, %p58
      %p60 = scmp.ne.s32.totalorder %s51, %s52
      %p61 = scmp.eq.s32.totalorder %s20, 0
      %p62 = por %p60, %p61
      %p63 = scmp.ne.s32.totalorder %s51, %s52
      %p64 = scmp.eq.s32.totalorder %s21, 1
      %p65 = por %p63, %p64
      %p67 = scmp.ne.s32.totalorder %s52, %s66
      %p68 = scmp.eq.s32.totalorder %s21, 0
      %p69 = por %p67, %p68
      %s71 = sadd.s32 %s70, 1
      %p74 = scmp.eq.s32.totalorder %s15, 1
      %p75 = scmp.ne.s32.totalorder %s70, %s72
      %p76 = scmp.eq.s32.totalorder %s15, 0
      %p77 = por %p75, %p76
      %p78 = scmp.ne.s32.totalorder %s70, %s72
      %p79 = scmp.eq.s32.totalorder %s20, 1
      %p80 = por %p78, %p79
      %p81 = scmp.ne.s32.totalorder %s72, %s73
      %p82 = scmp.eq.s32.totalorder %s20, 0
      %p83 = por %p81, %p82
      %p84 = scmp.ne.s32.totalorder %s72, %s73
      %p85 = scmp.eq.s32.totalorder %s21, 1
      %p86 = por %p84, %p85
      %p88 = scmp.ne.s32.totalorder %s73, %s87
      %p89 = scmp.eq.s32.totalorder %s21, 0
      %p90 = por %p88, %p89
      %s92 = sadd.s32 %s91, 1
      %p95 = scmp.eq.s32.totalorder %s15, 1
      %p96 = scmp.ne.s32.totalorder %s91, %s93
      %p97 = scmp.eq.s32.totalorder %s15, 0
      %p98 = por %p96, %p97
      %p99 = scmp.ne.s32.totalorder %s91, %s93
      %p100 = scmp.eq.s32.totalorder %s20, 1
      %p101 = por %p99, %p100
      %p102 = scmp.ne.s32.totalorder %s93, %s94
      %p103 = scmp.eq.s32.totalorder %s20, 0
      %p104 = por %p102, %p103
      %p105 = scmp.ne.s32.totalorder %s93, %s94
      %p106 = scmp.eq.s32.totalorder %s21, 1
      %p107 = por %p105, %p106
      %p109 = scmp.ne.s32.totalorder %s94, %s108
      %p110 = scmp.eq.s32.totalorder %s21, 0
      %p111 = por %p109, %p110
      %s113 = sadd.s32 %s112, 1
      %p116 = scmp.eq.s32.totalorder %s15, 1
      %p117 = scmp.ne.s32.totalorder %s112, %s114
      %p118 = scmp.eq.s32.totalorder %s15, 0
      %p119 = por %p117, %p118
      %p120 = scmp.ne.s32.totalorder %s112, %s114
      %p121 = scmp.eq.s32.totalorder %s20, 1
      %p122 = por %p120, %p121
      %p123 = scmp.ne.s32.totalorder %s114, %s115
      %p124 = scmp.eq.s32.totalorder %s20, 0
      %p125 = por %p123, %p124
      %p126 = scmp.ne.s32.totalorder %s114, %s115
      %p127 = scmp.eq.s32.totalorder %s21, 1
      %p128 = por %p126, %p127
      %p130 = scmp.ne.s32.totalorder %s115, %s129
      %p131 = scmp.eq.s32.totalorder %s21, 0
      %p132 = por %p130, %p131
      %s134 = sadd.s32 %s133, 1
      %p137 = scmp.eq.s32.totalorder %s15, 1
      %p138 = scmp.ne.s32.totalorder %s133, %s135
      %p139 = scmp.eq.s32.totalorder %s15, 0
      %p140 = por %p138, %p139
      %p141 = scmp.ne.s32.totalorder %s133, %s135
      %p142 = scmp.eq.s32.totalorder %s20, 1
      %p143 = por %p141, %p142
      %p144 = scmp.ne.s32.totalorder %s135, %s136
      %p145 = scmp.eq.s32.totalorder %s20, 0
      %p146 = por %p144, %p145
      %p147 = scmp.ne.s32.totalorder %s135, %s136
      %p148 = scmp.eq.s32.totalorder %s21, 1
      %p149 = por %p147, %p148
      %p151 = scmp.ne.s32.totalorder %s136, %s150
      %p152 = scmp.eq.s32.totalorder %s21, 0
      %p153 = por %p151, %p152
      %s155 = sadd.s32 %s154, 1
      %p158 = scmp.eq.s32.totalorder %s15, 1
      %p159 = scmp.ne.s32.totalorder %s154, %s156
      %p160 = scmp.eq.s32.totalorder %s15, 0
      %p161 = por %p159, %p160
      %p162 = scmp.ne.s32.totalorder %s154, %s156
      %p163 = scmp.eq.s32.totalorder %s20, 1
      %p164 = por %p162, %p163
      %p165 = scmp.ne.s32.totalorder %s156, %s157
      %p166 = scmp.eq.s32.totalorder %s20, 0
      %p167 = por %p165, %p166
      %p168 = scmp.ne.s32.totalorder %s156, %s157
      %p169 = scmp.eq.s32.totalorder %s21, 1
      %p170 = por %p168, %p169
      %p172 = scmp.ne.s32.totalorder %s157, %s171
      %p173 = scmp.eq.s32.totalorder %s21, 0
      %p174 = por %p172, %p173
      %s175 = ssub.s32 %s15, %s22
      %p176 = scmp.eq.s32.totalorder %s175, 0
      %s178 = sadd.s32 %s177, 1
      %s179 = scalar_select %p176, %s177, %s178
      %p182 = pneg %p176
      %p183 = scmp.eq.s32.totalorder %s15, 1
      %p184 = por %p182, %p183
      %p185 = scmp.ne.s32.totalorder %s177, %s180
      %p186 = scmp.eq.s32.totalorder %s15, 0
      %p187 = por %p185, %p186
      %p188 = scmp.ne.s32.totalorder %s177, %s180
      %p189 = scmp.eq.s32.totalorder %s20, 1
      %p190 = por %p188, %p189
      %p191 = scmp.ne.s32.totalorder %s180, %s181
      %p192 = scmp.eq.s32.totalorder %s20, 0
      %p193 = por %p191, %p192
      %p194 = scmp.ne.s32.totalorder %s180, %s181
      %p195 = scmp.eq.s32.totalorder %s21, 1
      %p196 = por %p194, %p195
      %p198 = scmp.ne.s32.totalorder %s181, %s197
      %p199 = scmp.eq.s32.totalorder %s21, 0
      %p200 = por %p198, %p199
      %p201 = scmp.le.s32.totalorder 1, %s15
      %p202 = scmp.lt.s32.totalorder %s15, 3
      %p203 = pnand %p201, %p202
      %p204 = pneg %p203
      // Predicated region
      $region9: #{basic_mlp_forward.1} parent=5 // pred_check
        _
      $region10: #{basic_mlp_forward.1} parent=5 // pred_check_branch
        %206 = sbr.rel (%p203) target = $region12
      $region11: #{basic_mlp_forward.1} parent=5 // pred_region
        %s207 = ssub.s32 %s15, 1
        // Predicated region
        $region13: #{basic_mlp_forward.1} parent=11 // pred_check
          %p208 = pneg %p62
        $region14: #{basic_mlp_forward.1} parent=11 // pred_check_branch
          %210 = sbr.rel (%p208) target = $region16
        $region15: #{basic_mlp_forward.1} parent=11 // pred_region
          %212 = vsyncadd [#allocation3], 0
          %s213 = sshll.u32 %s1, 4
          %s214 = int_to_ptr.hbm [resolvable:$true] %s213
          %s215 = sshll.u32 [#allocation2], 4
          %s216 = int_to_ptr.vmem [resolvable:$true] %s215
          %221 = dma.hbm_to_vmem [thread:$0]  %s214, 4096, %s216, [#allocation3], 128, 128, 8
        $region16: #{basic_mlp_forward.1} parent=11 // pred_fallthru
          _
        // Predicated region
        $region17: #{basic_mlp_forward.1} parent=11 // pred_check
          %p222 = pneg %p83
        $region18: #{basic_mlp_forward.1} parent=11 // pred_check_branch
          %224 = sbr.rel (%p222) target = $region20
        $region19: #{basic_mlp_forward.1} parent=11 // pred_region
          _
        $region20: #{basic_mlp_forward.1} parent=11 // pred_fallthru
          _
        // Predicated region
        $region21: #{basic_mlp_forward.1} parent=11 // pred_check
          %p225 = pneg %p104
        $region22: #{basic_mlp_forward.1} parent=11 // pred_check_branch
          %227 = sbr.rel (%p225) target = $region24
        $region23: #{basic_mlp_forward.1} parent=11 // pred_region
          %229 = vsyncadd [#allocation5], 0
          %s230 = sshll.u32 %s3, 4
          %s231 = int_to_ptr.hbm [resolvable:$true] %s230
          %s232 = sshll.u32 [#allocation4], 4
          %s233 = int_to_ptr.vmem [resolvable:$true] %s232
          %238 = dma.hbm_to_vmem [thread:$0]  %s231, 12288, %s233, [#allocation5], 128, 128, 8
        $region24: #{basic_mlp_forward.1} parent=11 // pred_fallthru
          _
        // Predicated region
        $region25: #{basic_mlp_forward.1} parent=11 // pred_check
          %p239 = pneg %p125
        $region26: #{basic_mlp_forward.1} parent=11 // pred_check_branch
          %241 = sbr.rel (%p239) target = $region28
        $region27: #{basic_mlp_forward.1} parent=11 // pred_region
          _
        $region28: #{basic_mlp_forward.1} parent=11 // pred_fallthru
          _
        // Predicated region
        $region29: #{basic_mlp_forward.1} parent=11 // pred_check
          %p242 = pneg %p146
        $region30: #{basic_mlp_forward.1} parent=11 // pred_check_branch
          %244 = sbr.rel (%p242) target = $region32
        $region31: #{basic_mlp_forward.1} parent=11 // pred_region
          _
        $region32: #{basic_mlp_forward.1} parent=11 // pred_fallthru
          _
        // Predicated region
        $region33: #{basic_mlp_forward.1} parent=11 // pred_check
          %p245 = pneg %p167
        $region34: #{basic_mlp_forward.1} parent=11 // pred_check_branch
          %247 = sbr.rel (%p245) target = $region36
        $region35: #{basic_mlp_forward.1} parent=11 // pred_region
          _
        $region36: #{basic_mlp_forward.1} parent=11 // pred_fallthru
          _
      $region12: #{basic_mlp_forward.1} parent=5 // pred_fallthru
        _
      %p248 = scmp.lt.s32.totalorder %s15, 2
      // Predicated region
      $region37: #{basic_mlp_forward.1} parent=5 // pred_check
        %p249 = pneg %p248
      $region38: #{basic_mlp_forward.1} parent=5 // pred_check_branch
        %251 = sbr.rel (%p249) target = $region40
      $region39: #{basic_mlp_forward.1} parent=5 // pred_region
        // Predicated region
        $region41: #{basic_mlp_forward.1} parent=39 // pred_check
          %p252 = pneg %p35
        $region42: #{basic_mlp_forward.1} parent=39 // pred_check_branch
          %254 = sbr.rel (%p252) target = $region44
        $region43: #{basic_mlp_forward.1} parent=39 // pred_region
          %s255 = smul.u32 4, %s15
          %p256 = scmp.lt.s32.totalorder %s255, 7
          %s257 = scalar_select %p256, %s255, 7
          %s258 = smul.addr %s257, 2
          %s259 = smul.addr %s258, 4
          %s260 = scalar_lea.vmem %s0, %s259
          %s261 = smul.u32 4, %s15
        $region44: #{basic_mlp_forward.1} parent=39 // pred_fallthru
          _
      $region40: #{basic_mlp_forward.1} parent=5 // pred_fallthru
        _
      %p262 = scmp.le.s32.totalorder 1, %s15
      %p263 = scmp.lt.s32.totalorder %s15, 3
      %p264 = pnand %p262, %p263
      %p265 = pneg %p264
      // Predicated region
      $region45: #{basic_mlp_forward.1} parent=5 // pred_check
        _
      $region46: #{basic_mlp_forward.1} parent=5 // pred_check_branch
        %267 = sbr.rel (%p264) target = $region48
      $region47: #{basic_mlp_forward.1} parent=5 // pred_region
        %s268 = ssub.s32 %s15, 1
        // Predicated region
        $region49: #{basic_mlp_forward.1} parent=47 // pred_check
          %p269 = pneg %p62
        $region50: #{basic_mlp_forward.1} parent=47 // pred_check_branch
          %271 = sbr.rel (%p269) target = $region52
        $region51: #{basic_mlp_forward.1} parent=47 // pred_region
          %273 = dma.done [#allocation3], 4096
        $region52: #{basic_mlp_forward.1} parent=47 // pred_fallthru
          _
        // Predicated region
        $region53: #{basic_mlp_forward.1} parent=47 // pred_check
          %p274 = pneg %p104
        $region54: #{basic_mlp_forward.1} parent=47 // pred_check_branch
          %276 = sbr.rel (%p274) target = $region56
        $region55: #{basic_mlp_forward.1} parent=47 // pred_region
          %278 = dma.done [#allocation5], 12288
        $region56: #{basic_mlp_forward.1} parent=47 // pred_fallthru
          _
        %s279 = smul.u32 4, %s20
        %p280 = scmp.lt.s32.totalorder %s279, 7
        %s281 = scalar_select %p280, %s279, 7
        %s282 = smul.addr %s281, 2
        %s283 = smul.addr %s282, 4
        %s284 = scalar_lea.vmem %s0, %s283
        %p285 = pneg %p41
        %p286 = pneg %p38
        %p287 = pneg %p62
        %p288 = pneg %p59
        %p289 = pneg %p83
        %p290 = pneg %p80
        %p291 = pneg %p104
        %p292 = pneg %p101
        %p293 = pneg %p125
        %p294 = pneg %p122
        %p295 = pneg %p146
        %p296 = pneg %p143
        %p297 = pneg %p167
        %p298 = pneg %p164
        %p299 = pneg %p193
        %p300 = pneg %p190
        %s301 = smul.u32 4, %s20
        %p302 = scmp.lt.s32.totalorder %s301, 7
        %s303 = scalar_select %p302, %s301, 7
        %s304 = smul.addr %s303, 8
        %s305 = scalar_lea.vmem %s7, %s304
        %s306 = smul.u32 4, %s20
        %p307 = scmp.lt.s32.totalorder %s306, 7
        %s308 = scalar_select %p307, %s306, 7
        %s309 = smul.addr %s308, 2
        %s310 = smul.addr %s309, 4
        %s311 = scalar_lea.vmem %s0, %s310
        %s312 = smul.u32 4, %s20
        %s313 = smul.u32 4, %s20
        %p314 = scmp.lt.s32.totalorder %s313, 7
        %s315 = scalar_select %p314, %s313, 7
        %s316 = smul.addr %s315, 8
        %s317 = scalar_lea.vmem %s7, %s316
        %s318 = smul.u32 4, %s20
        %v319 = vld [vmem:[%s311] sm:$0xff]
        %v320 = vld [vmem:[%s311 + $0x8] sm:$0xff]
        %v321 = vld [vmem:[%s311 + $0x10] sm:$0xff]
        %v322 = vld [vmem:[%s311 + $0x18] sm:$0xff]
        %v323 = vld [vmem:[#allocation2] sm:$0xff]
        %v324 = vld [vmem:[#allocation2 + $0x8] sm:$0xff]
        %v325 = vld [vmem:[#allocation2 + $0x10] sm:$0xff]
        %v326 = vld [vmem:[#allocation2 + $0x18] sm:$0xff]
        %v327 = vld [vmem:[#allocation2 + $0x20] sm:$0xff]
        %v328 = vld [vmem:[#allocation2 + $0x28] sm:$0xff]
        %v329 = vld [vmem:[#allocation2 + $0x30] sm:$0xff]
        %v330 = vld [vmem:[#allocation2 + $0x38] sm:$0xff]
        %v331 = vld [vmem:[#allocation2 + $0x40] sm:$0xff]
        %v332 = vld [vmem:[#allocation2 + $0x48] sm:$0xff]
        %v333 = vld [vmem:[#allocation2 + $0x50] sm:$0xff]
        %v334 = vld [vmem:[#allocation2 + $0x58] sm:$0xff]
        %v335 = vld [vmem:[#allocation2 + $0x60] sm:$0xff]
        %v336 = vld [vmem:[#allocation2 + $0x68] sm:$0xff]
        %v337 = vld [vmem:[#allocation2 + $0x70] sm:$0xff]
        %v338 = vld [vmem:[#allocation2 + $0x78] sm:$0xff]
        %v339 = vld [vmem:[#allocation2 + $0x80] sm:$0xff]
        %v340 = vld [vmem:[#allocation2 + $0x88] sm:$0xff]
        %v341 = vld [vmem:[#allocation2 + $0x90] sm:$0xff]
        %v342 = vld [vmem:[#allocation2 + $0x98] sm:$0xff]
        %v343 = vld [vmem:[#allocation2 + $0xa0] sm:$0xff]
        %v344 = vld [vmem:[#allocation2 + $0xa8] sm:$0xff]
        %v345 = vld [vmem:[#allocation2 + $0xb0] sm:$0xff]
        %v346 = vld [vmem:[#allocation2 + $0xb8] sm:$0xff]
        %v347 = vld [vmem:[#allocation2 + $0xc0] sm:$0xff]
        %v348 = vld [vmem:[#allocation2 + $0xc8] sm:$0xff]
        %v349 = vld [vmem:[#allocation2 + $0xd0] sm:$0xff]
        %v350 = vld [vmem:[#allocation2 + $0xd8] sm:$0xff]
        %v351 = vld [vmem:[#allocation2 + $0xe0] sm:$0xff]
        %v352 = vld [vmem:[#allocation2 + $0xe8] sm:$0xff]
        %v353 = vld [vmem:[#allocation2 + $0xf0] sm:$0xff]
        %v354 = vld [vmem:[#allocation2 + $0xf8] sm:$0xff]
        %v355 = vld [vmem:[%s2] sm:$0x3]
        %v357 = vperm.slane %v355, 0
        %v358 = vperm.slane %v355, 1
        %v365 = vunpack.c.l.b16 %v319
        %v366 = vunpack.c.h.b16 %v319
        %v367 = vunpack.c.l.b16 %v320
        %v368 = vunpack.c.h.b16 %v320
        %v369 = vunpack.c.l.b16 %v321
        %v370 = vunpack.c.h.b16 %v321
        %v371 = vunpack.c.l.b16 %v322
        %v372 = vunpack.c.h.b16 %v322
        %v373 = vpack.c.b16 %v367, %v365
        %v374 = vpack.c.b16 %v368, %v366
        %v375 = vpack.c.b16 %v371, %v369
        %v376 = vpack.c.b16 %v372, %v370
        %v413 = vunpack.c.l.b16 %v323
        %v414 = vunpack.c.h.b16 %v323
        %v415 = vunpack.c.l.b16 %v324
        %v416 = vunpack.c.h.b16 %v324
        %v417 = vunpack.c.l.b16 %v325
        %v418 = vunpack.c.h.b16 %v325
        %v419 = vunpack.c.l.b16 %v326
        %v420 = vunpack.c.h.b16 %v326
        %v421 = vunpack.c.l.b16 %v327
        %v422 = vunpack.c.h.b16 %v327
        %v423 = vunpack.c.l.b16 %v328
        %v424 = vunpack.c.h.b16 %v328
        %v425 = vunpack.c.l.b16 %v329
        %v426 = vunpack.c.h.b16 %v329
        %v427 = vunpack.c.l.b16 %v330
        %v428 = vunpack.c.h.b16 %v330
        %v429 = vunpack.c.l.b16 %v331
        %v430 = vunpack.c.h.b16 %v331
        %v431 = vunpack.c.l.b16 %v332
        %v432 = vunpack.c.h.b16 %v332
        %v433 = vunpack.c.l.b16 %v333
        %v434 = vunpack.c.h.b16 %v333
        %v435 = vunpack.c.l.b16 %v334
        %v436 = vunpack.c.h.b16 %v334
        %v437 = vunpack.c.l.b16 %v335
        %v438 = vunpack.c.h.b16 %v335
        %v439 = vunpack.c.l.b16 %v336
        %v440 = vunpack.c.h.b16 %v336
        %v441 = vunpack.c.l.b16 %v337
        %v442 = vunpack.c.h.b16 %v337
        %v443 = vunpack.c.l.b16 %v338
        %v444 = vunpack.c.h.b16 %v338
        %v445 = vunpack.c.l.b16 %v339
        %v446 = vunpack.c.h.b16 %v339
        %v447 = vunpack.c.l.b16 %v340
        %v448 = vunpack.c.h.b16 %v340
        %v449 = vunpack.c.l.b16 %v341
        %v450 = vunpack.c.h.b16 %v341
        %v451 = vunpack.c.l.b16 %v342
        %v452 = vunpack.c.h.b16 %v342
        %v453 = vunpack.c.l.b16 %v343
        %v454 = vunpack.c.h.b16 %v343
        %v455 = vunpack.c.l.b16 %v344
        %v456 = vunpack.c.h.b16 %v344
        %v457 = vunpack.c.l.b16 %v345
        %v458 = vunpack.c.h.b16 %v345
        %v459 = vunpack.c.l.b16 %v346
        %v460 = vunpack.c.h.b16 %v346
        %v461 = vunpack.c.l.b16 %v347
        %v462 = vunpack.c.h.b16 %v347
        %v463 = vunpack.c.l.b16 %v348
        %v464 = vunpack.c.h.b16 %v348
        %v465 = vunpack.c.l.b16 %v349
        %v466 = vunpack.c.h.b16 %v349
        %v467 = vunpack.c.l.b16 %v350
        %v468 = vunpack.c.h.b16 %v350
        %v469 = vunpack.c.l.b16 %v351
        %v470 = vunpack.c.h.b16 %v351
        %v471 = vunpack.c.l.b16 %v352
        %v472 = vunpack.c.h.b16 %v352
        %v473 = vunpack.c.l.b16 %v353
        %v474 = vunpack.c.h.b16 %v353
        %v475 = vunpack.c.l.b16 %v354
        %v476 = vunpack.c.h.b16 %v354
        %v477 = vpack.c.b16 %v415, %v413
        %v478 = vpack.c.b16 %v416, %v414
        %v479 = vpack.c.b16 %v419, %v417
        %v480 = vpack.c.b16 %v420, %v418
        %v481 = vpack.c.b16 %v423, %v421
        %v482 = vpack.c.b16 %v424, %v422
        %v483 = vpack.c.b16 %v427, %v425
        %v484 = vpack.c.b16 %v428, %v426
        %v485 = vpack.c.b16 %v431, %v429
        %v486 = vpack.c.b16 %v432, %v430
        %v487 = vpack.c.b16 %v435, %v433
        %v488 = vpack.c.b16 %v436, %v434
        %v489 = vpack.c.b16 %v439, %v437
        %v490 = vpack.c.b16 %v440, %v438
        %v491 = vpack.c.b16 %v443, %v441
        %v492 = vpack.c.b16 %v444, %v442
        %v493 = vpack.c.b16 %v447, %v445
        %v494 = vpack.c.b16 %v448, %v446
        %v495 = vpack.c.b16 %v451, %v449
        %v496 = vpack.c.b16 %v452, %v450
        %v497 = vpack.c.b16 %v455, %v453
        %v498 = vpack.c.b16 %v456, %v454
        %v499 = vpack.c.b16 %v459, %v457
        %v500 = vpack.c.b16 %v460, %v458
        %v501 = vpack.c.b16 %v463, %v461
        %v502 = vpack.c.b16 %v464, %v462
        %v503 = vpack.c.b16 %v467, %v465
        %v504 = vpack.c.b16 %v468, %v466
        %v505 = vpack.c.b16 %v471, %v469
        %v506 = vpack.c.b16 %v472, %v470
        %v507 = vpack.c.b16 %v475, %v473
        %v508 = vpack.c.b16 %v476, %v474
        %541 = vmatpush.bf16.msra.mxu0 %v491
        %542 = vmatpush.bf16.msra.mxu0 %v489
        %543 = vmatpush.bf16.msra.mxu0 %v487
        %544 = vmatpush.bf16.msra.mxu0 %v485
        %545 = vmatpush.bf16.msra.mxu0 %v483
        %546 = vmatpush.bf16.msra.mxu0 %v481
        %547 = vmatpush.bf16.msra.mxu0 %v479
        %548 = vmatpush.bf16.msra.mxu0 %v477
        %549 = vmatmul.bf16.gmra.mxu0 %v373
        %v550 = vpop.f32.mrf.mxu0
        %v551 = vadd.f32 %v357, %v550
        %v552 = vpop.f32.mrf.mxu0
        %v553 = vadd.f32 %v357, %v552
        %554 = vmatmul.bf16.gmra.mxu0 %v375
        %v555 = vpop.f32.mrf.mxu0
        %v556 = vadd.f32 %v357, %v555
        %v557 = vpop.f32.mrf.mxu0
        %v558 = vadd.f32 %v357, %v557
        %559 = vdwg.mxu0
        %560 = vmatpush.bf16.msra.mxu0 %v507
        %561 = vmatpush.bf16.msra.mxu0 %v505
        %562 = vmatpush.bf16.msra.mxu0 %v503
        %563 = vmatpush.bf16.msra.mxu0 %v501
        %564 = vmatpush.bf16.msra.mxu0 %v499
        %565 = vmatpush.bf16.msra.mxu0 %v497
        %566 = vmatpush.bf16.msra.mxu0 %v495
        %567 = vmatpush.bf16.msra.mxu0 %v493
        %568 = vmatmul.bf16.gmra.mxu0 %v374
        %v569 = vpop.f32.mrf.mxu0
        %v570 = vadd.f32 %v551, %v569
        %v571 = vpop.f32.mrf.mxu0
        %v572 = vadd.f32 %v553, %v571
        %573 = vmatmul.bf16.gmra.mxu0 %v376
        %v574 = vpop.f32.mrf.mxu0
        %v575 = vadd.f32 %v556, %v574
        %v576 = vpop.f32.mrf.mxu0
        %v577 = vadd.f32 %v558, %v576
        %578 = vdwg.mxu0
        %579 = vmatpush.bf16.msra.mxu0 %v492
        %580 = vmatpush.bf16.msra.mxu0 %v490
        %581 = vmatpush.bf16.msra.mxu0 %v488
        %582 = vmatpush.bf16.msra.mxu0 %v486
        %583 = vmatpush.bf16.msra.mxu0 %v484
        %584 = vmatpush.bf16.msra.mxu0 %v482
        %585 = vmatpush.bf16.msra.mxu0 %v480
        %586 = vmatpush.bf16.msra.mxu0 %v478
        %587 = vmatmul.bf16.gmra.mxu0 %v373
        %v588 = vpop.f32.mrf.mxu0
        %v589 = vadd.f32 %v358, %v588
        %v590 = vpop.f32.mrf.mxu0
        %v591 = vadd.f32 %v358, %v590
        %592 = vmatmul.bf16.gmra.mxu0 %v375
        %v593 = vpop.f32.mrf.mxu0
        %v594 = vadd.f32 %v358, %v593
        %v595 = vpop.f32.mrf.mxu0
        %v596 = vadd.f32 %v358, %v595
        %597 = vdwg.mxu0
        %598 = vmatpush.bf16.msra.mxu0 %v508
        %599 = vmatpush.bf16.msra.mxu0 %v506
        %600 = vmatpush.bf16.msra.mxu0 %v504
        %601 = vmatpush.bf16.msra.mxu0 %v502
        %602 = vmatpush.bf16.msra.mxu0 %v500
        %603 = vmatpush.bf16.msra.mxu0 %v498
        %604 = vmatpush.bf16.msra.mxu0 %v496
        %605 = vmatpush.bf16.msra.mxu0 %v494
        %606 = vmatmul.bf16.gmra.mxu0 %v374
        %v607 = vpop.f32.mrf.mxu0
        %v608 = vadd.f32 %v589, %v607
        %v609 = vpop.f32.mrf.mxu0
        %v610 = vadd.f32 %v591, %v609
        %611 = vmatmul.bf16.gmra.mxu0 %v376
        %v612 = vpop.f32.mrf.mxu0
        %v613 = vadd.f32 %v594, %v612
        %v614 = vpop.f32.mrf.mxu0
        %v615 = vadd.f32 %v596, %v614
        %616 = vdwg.mxu0
        %v617 = vmax.f32 %v570, 0.0
        %v618 = vmax.f32 %v608, 0.0
        %v619 = vmax.f32 %v572, 0.0
        %v620 = vmax.f32 %v610, 0.0
        %v621 = vmax.f32 %v575, 0.0
        %v622 = vmax.f32 %v613, 0.0
        %v623 = vmax.f32 %v577, 0.0
        %v624 = vmax.f32 %v615, 0.0
        %v625 = vpack.c.bf16 %v619, %v617
        %v626 = vpack.c.bf16 %v620, %v618
        %v627 = vpack.c.bf16 %v623, %v621
        %v628 = vpack.c.bf16 %v624, %v622
        %v629 = vld [vmem:[#allocation4] sm:$0xff]
        %v630 = vld [vmem:[#allocation4 + $0x8] sm:$0xff]
        %v631 = vld [vmem:[#allocation4 + $0x10] sm:$0xff]
        %v632 = vld [vmem:[#allocation4 + $0x18] sm:$0xff]
        %v633 = vld [vmem:[#allocation4 + $0x20] sm:$0xff]
        %v634 = vld [vmem:[#allocation4 + $0x28] sm:$0xff]
        %v635 = vld [vmem:[#allocation4 + $0x30] sm:$0xff]
        %v636 = vld [vmem:[#allocation4 + $0x38] sm:$0xff]
        %v637 = vld [vmem:[#allocation4 + $0x40] sm:$0xff]
        %v638 = vld [vmem:[#allocation4 + $0x48] sm:$0xff]
        %v639 = vld [vmem:[#allocation4 + $0x50] sm:$0xff]
        %v640 = vld [vmem:[#allocation4 + $0x58] sm:$0xff]
        %v641 = vld [vmem:[#allocation4 + $0x60] sm:$0xff]
        %v642 = vld [vmem:[#allocation4 + $0x68] sm:$0xff]
        %v643 = vld [vmem:[#allocation4 + $0x70] sm:$0xff]
        %v644 = vld [vmem:[#allocation4 + $0x78] sm:$0xff]
        %v645 = vld [vmem:[#allocation4 + $0x80] sm:$0xff]
        %v646 = vld [vmem:[#allocation4 + $0x88] sm:$0xff]
        %v647 = vld [vmem:[#allocation4 + $0x90] sm:$0xff]
        %v648 = vld [vmem:[#allocation4 + $0x98] sm:$0xff]
        %v649 = vld [vmem:[#allocation4 + $0xa0] sm:$0xff]
        %v650 = vld [vmem:[#allocation4 + $0xa8] sm:$0xff]
        %v651 = vld [vmem:[#allocation4 + $0xb0] sm:$0xff]
        %v652 = vld [vmem:[#allocation4 + $0xb8] sm:$0xff]
        %v653 = vld [vmem:[#allocation4 + $0xc0] sm:$0xff]
        %v654 = vld [vmem:[#allocation4 + $0xc8] sm:$0xff]
        %v655 = vld [vmem:[#allocation4 + $0xd0] sm:$0xff]
        %v656 = vld [vmem:[#allocation4 + $0xd8] sm:$0xff]
        %v657 = vld [vmem:[#allocation4 + $0xe0] sm:$0xff]
        %v658 = vld [vmem:[#allocation4 + $0xe8] sm:$0xff]
        %v659 = vld [vmem:[#allocation4 + $0xf0] sm:$0xff]
        %v660 = vld [vmem:[#allocation4 + $0xf8] sm:$0xff]
        %v661 = vld [vmem:[%s4] ss:$4 sm:$0x3]
        %v663 = vperm.slane %v661, 0
        %v664 = vperm.slane %v661, 1
        %v699 = vunpack.c.l.b16 %v629
        %v700 = vunpack.c.h.b16 %v629
        %v701 = vunpack.c.l.b16 %v630
        %v702 = vunpack.c.h.b16 %v630
        %v703 = vunpack.c.l.b16 %v631
        %v704 = vunpack.c.h.b16 %v631
        %v705 = vunpack.c.l.b16 %v632
        %v706 = vunpack.c.h.b16 %v632
        %v707 = vunpack.c.l.b16 %v633
        %v708 = vunpack.c.h.b16 %v633
        %v709 = vunpack.c.l.b16 %v634
        %v710 = vunpack.c.h.b16 %v634
        %v711 = vunpack.c.l.b16 %v635
        %v712 = vunpack.c.h.b16 %v635
        %v713 = vunpack.c.l.b16 %v636
        %v714 = vunpack.c.h.b16 %v636
        %v715 = vunpack.c.l.b16 %v637
        %v716 = vunpack.c.h.b16 %v637
        %v717 = vunpack.c.l.b16 %v638
        %v718 = vunpack.c.h.b16 %v638
        %v719 = vunpack.c.l.b16 %v639
        %v720 = vunpack.c.h.b16 %v639
        %v721 = vunpack.c.l.b16 %v640
        %v722 = vunpack.c.h.b16 %v640
        %v723 = vunpack.c.l.b16 %v641
        %v724 = vunpack.c.h.b16 %v641
        %v725 = vunpack.c.l.b16 %v642
        %v726 = vunpack.c.h.b16 %v642
        %v727 = vunpack.c.l.b16 %v643
        %v728 = vunpack.c.h.b16 %v643
        %v729 = vunpack.c.l.b16 %v644
        %v730 = vunpack.c.h.b16 %v644
        %v731 = vunpack.c.l.b16 %v645
        %v732 = vunpack.c.h.b16 %v645
        %v733 = vunpack.c.l.b16 %v646
        %v734 = vunpack.c.h.b16 %v646
        %v735 = vunpack.c.l.b16 %v647
        %v736 = vunpack.c.h.b16 %v647
        %v737 = vunpack.c.l.b16 %v648
        %v738 = vunpack.c.h.b16 %v648
        %v739 = vunpack.c.l.b16 %v649
        %v740 = vunpack.c.h.b16 %v649
        %v741 = vunpack.c.l.b16 %v650
        %v742 = vunpack.c.h.b16 %v650
        %v743 = vunpack.c.l.b16 %v651
        %v744 = vunpack.c.h.b16 %v651
        %v745 = vunpack.c.l.b16 %v652
        %v746 = vunpack.c.h.b16 %v652
        %v747 = vunpack.c.l.b16 %v653
        %v748 = vunpack.c.h.b16 %v653
        %v749 = vunpack.c.l.b16 %v654
        %v750 = vunpack.c.h.b16 %v654
        %v751 = vunpack.c.l.b16 %v655
        %v752 = vunpack.c.h.b16 %v655
        %v753 = vunpack.c.l.b16 %v656
        %v754 = vunpack.c.h.b16 %v656
        %v755 = vunpack.c.l.b16 %v657
        %v756 = vunpack.c.h.b16 %v657
        %v757 = vunpack.c.l.b16 %v658
        %v758 = vunpack.c.h.b16 %v658
        %v759 = vunpack.c.l.b16 %v659
        %v760 = vunpack.c.h.b16 %v659
        %v761 = vunpack.c.l.b16 %v660
        %v762 = vunpack.c.h.b16 %v660
        %v763 = vpack.c.b16 %v701, %v699
        %v764 = vpack.c.b16 %v702, %v700
        %v765 = vpack.c.b16 %v705, %v703
        %v766 = vpack.c.b16 %v706, %v704
        %v767 = vpack.c.b16 %v709, %v707
        %v768 = vpack.c.b16 %v710, %v708
        %v769 = vpack.c.b16 %v713, %v711
        %v770 = vpack.c.b16 %v714, %v712
        %v771 = vpack.c.b16 %v717, %v715
        %v772 = vpack.c.b16 %v718, %v716
        %v773 = vpack.c.b16 %v721, %v719
        %v774 = vpack.c.b16 %v722, %v720
        %v775 = vpack.c.b16 %v725, %v723
        %v776 = vpack.c.b16 %v726, %v724
        %v777 = vpack.c.b16 %v729, %v727
        %v778 = vpack.c.b16 %v730, %v728
        %v779 = vpack.c.b16 %v733, %v731
        %v780 = vpack.c.b16 %v734, %v732
        %v781 = vpack.c.b16 %v737, %v735
        %v782 = vpack.c.b16 %v738, %v736
        %v783 = vpack.c.b16 %v741, %v739
        %v784 = vpack.c.b16 %v742, %v740
        %v785 = vpack.c.b16 %v745, %v743
        %v786 = vpack.c.b16 %v746, %v744
        %v787 = vpack.c.b16 %v749, %v747
        %v788 = vpack.c.b16 %v750, %v748
        %v789 = vpack.c.b16 %v753, %v751
        %v790 = vpack.c.b16 %v754, %v752
        %v791 = vpack.c.b16 %v757, %v755
        %v792 = vpack.c.b16 %v758, %v756
        %v793 = vpack.c.b16 %v761, %v759
        %v794 = vpack.c.b16 %v762, %v760
        %827 = vmatpush.bf16.msra.mxu0 %v777
        %828 = vmatpush.bf16.msra.mxu0 %v775
        %829 = vmatpush.bf16.msra.mxu0 %v773
        %830 = vmatpush.bf16.msra.mxu0 %v771
        %831 = vmatpush.bf16.msra.mxu0 %v769
        %832 = vmatpush.bf16.msra.mxu0 %v767
        %833 = vmatpush.bf16.msra.mxu0 %v765
        %834 = vmatpush.bf16.msra.mxu0 %v763
        %835 = vmatmul.bf16.gmra.mxu0 %v625
        %v836 = vpop.f32.mrf.mxu0
        %v837 = vadd.f32 %v663, %v836
        %v838 = vpop.f32.mrf.mxu0
        %v839 = vadd.f32 %v663, %v838
        %840 = vmatmul.bf16.gmra.mxu0 %v627
        %v841 = vpop.f32.mrf.mxu0
        %v842 = vadd.f32 %v663, %v841
        %v843 = vpop.f32.mrf.mxu0
        %v844 = vadd.f32 %v663, %v843
        %845 = vdwg.mxu0
        %846 = vmatpush.bf16.msra.mxu0 %v793
        %847 = vmatpush.bf16.msra.mxu0 %v791
        %848 = vmatpush.bf16.msra.mxu0 %v789
        %849 = vmatpush.bf16.msra.mxu0 %v787
        %850 = vmatpush.bf16.msra.mxu0 %v785
        %851 = vmatpush.bf16.msra.mxu0 %v783
        %852 = vmatpush.bf16.msra.mxu0 %v781
        %853 = vmatpush.bf16.msra.mxu0 %v779
        %854 = vmatmul.bf16.gmra.mxu0 %v626
        %v855 = vpop.f32.mrf.mxu0
        %v856 = vadd.f32 %v837, %v855
        %v857 = vpop.f32.mrf.mxu0
        %v858 = vadd.f32 %v839, %v857
        %859 = vmatmul.bf16.gmra.mxu0 %v628
        %v860 = vpop.f32.mrf.mxu0
        %v861 = vadd.f32 %v842, %v860
        %v862 = vpop.f32.mrf.mxu0
        %v863 = vadd.f32 %v844, %v862
        %864 = vdwg.mxu0
        %865 = vmatpush.bf16.msra.mxu0 %v778
        %866 = vmatpush.bf16.msra.mxu0 %v776
        %867 = vmatpush.bf16.msra.mxu0 %v774
        %868 = vmatpush.bf16.msra.mxu0 %v772
        %869 = vmatpush.bf16.msra.mxu0 %v770
        %870 = vmatpush.bf16.msra.mxu0 %v768
        %871 = vmatpush.bf16.msra.mxu0 %v766
        %872 = vmatpush.bf16.msra.mxu0 %v764
        %873 = vmatmul.bf16.gmra.mxu0 %v625
        %v874 = vpop.f32.mrf.mxu0
        %v875 = vadd.f32 %v664, %v874
        %v876 = vpop.f32.mrf.mxu0
        %v877 = vadd.f32 %v664, %v876
        %878 = vmatmul.bf16.gmra.mxu0 %v627
        %v879 = vpop.f32.mrf.mxu0
        %v880 = vadd.f32 %v664, %v879
        %v881 = vpop.f32.mrf.mxu0
        %v882 = vadd.f32 %v664, %v881
        %883 = vdwg.mxu0
        %884 = vmatpush.bf16.msra.mxu0 %v794
        %885 = vmatpush.bf16.msra.mxu0 %v792
        %886 = vmatpush.bf16.msra.mxu0 %v790
        %887 = vmatpush.bf16.msra.mxu0 %v788
        %888 = vmatpush.bf16.msra.mxu0 %v786
        %889 = vmatpush.bf16.msra.mxu0 %v784
        %890 = vmatpush.bf16.msra.mxu0 %v782
        %891 = vmatpush.bf16.msra.mxu0 %v780
        %892 = vmatmul.bf16.gmra.mxu0 %v626
        %v893 = vpop.f32.mrf.mxu0
        %v894 = vadd.f32 %v875, %v893
        %v895 = vpop.f32.mrf.mxu0
        %v896 = vadd.f32 %v877, %v895
        %897 = vmatmul.bf16.gmra.mxu0 %v628
        %v898 = vpop.f32.mrf.mxu0
        %v899 = vadd.f32 %v880, %v898
        %v900 = vpop.f32.mrf.mxu0
        %v901 = vadd.f32 %v882, %v900
        %902 = vdwg.mxu0
        %v903 = vmax.f32 %v856, 0.0
        %v904 = vmax.f32 %v894, 0.0
        %v905 = vmax.f32 %v858, 0.0
        %v906 = vmax.f32 %v896, 0.0
        %v907 = vmax.f32 %v861, 0.0
        %v908 = vmax.f32 %v899, 0.0
        %v909 = vmax.f32 %v863, 0.0
        %v910 = vmax.f32 %v901, 0.0
        %v911 = vpack.c.bf16 %v905, %v903
        %v912 = vpack.c.bf16 %v906, %v904
        %v913 = vpack.c.bf16 %v909, %v907
        %v914 = vpack.c.bf16 %v910, %v908
        %s915 = scalar_lea.vmem [#allocation4], 256
        %v916 = vld [vmem:[%s915] sm:$0xff]
        %v917 = vld [vmem:[%s915 + $0x8] sm:$0xff]
        %v918 = vld [vmem:[%s915 + $0x10] sm:$0xff]
        %v919 = vld [vmem:[%s915 + $0x18] sm:$0xff]
        %v920 = vld [vmem:[%s915 + $0x20] sm:$0xff]
        %v921 = vld [vmem:[%s915 + $0x28] sm:$0xff]
        %v922 = vld [vmem:[%s915 + $0x30] sm:$0xff]
        %v923 = vld [vmem:[%s915 + $0x38] sm:$0xff]
        %v924 = vld [vmem:[%s915 + $0x40] sm:$0xff]
        %v925 = vld [vmem:[%s915 + $0x48] sm:$0xff]
        %v926 = vld [vmem:[%s915 + $0x50] sm:$0xff]
        %v927 = vld [vmem:[%s915 + $0x58] sm:$0xff]
        %v928 = vld [vmem:[%s915 + $0x60] sm:$0xff]
        %v929 = vld [vmem:[%s915 + $0x68] sm:$0xff]
        %v930 = vld [vmem:[%s915 + $0x70] sm:$0xff]
        %v931 = vld [vmem:[%s915 + $0x78] sm:$0xff]
        %v932 = vld [vmem:[%s915 + $0x80] sm:$0xff]
        %v933 = vld [vmem:[%s915 + $0x88] sm:$0xff]
        %v934 = vld [vmem:[%s915 + $0x90] sm:$0xff]
        %v935 = vld [vmem:[%s915 + $0x98] sm:$0xff]
        %v936 = vld [vmem:[%s915 + $0xa0] sm:$0xff]
        %v937 = vld [vmem:[%s915 + $0xa8] sm:$0xff]
        %v938 = vld [vmem:[%s915 + $0xb0] sm:$0xff]
        %v939 = vld [vmem:[%s915 + $0xb8] sm:$0xff]
        %v940 = vld [vmem:[%s915 + $0xc0] sm:$0xff]
        %v941 = vld [vmem:[%s915 + $0xc8] sm:$0xff]
        %v942 = vld [vmem:[%s915 + $0xd0] sm:$0xff]
        %v943 = vld [vmem:[%s915 + $0xd8] sm:$0xff]
        %v944 = vld [vmem:[%s915 + $0xe0] sm:$0xff]
        %v945 = vld [vmem:[%s915 + $0xe8] sm:$0xff]
        %v946 = vld [vmem:[%s915 + $0xf0] sm:$0xff]
        %v947 = vld [vmem:[%s915 + $0xf8] sm:$0xff]
        %s948 = scalar_lea.vmem %s4, 1
        %v949 = vld [vmem:[%s948] ss:$4 sm:$0x3]
        %v951 = vperm.slane %v949, 0
        %v952 = vperm.slane %v949, 1
        %v987 = vunpack.c.l.b16 %v916
        %v988 = vunpack.c.h.b16 %v916
        %v989 = vunpack.c.l.b16 %v917
        %v990 = vunpack.c.h.b16 %v917
        %v991 = vunpack.c.l.b16 %v918
        %v992 = vunpack.c.h.b16 %v918
        %v993 = vunpack.c.l.b16 %v919
        %v994 = vunpack.c.h.b16 %v919
        %v995 = vunpack.c.l.b16 %v920
        %v996 = vunpack.c.h.b16 %v920
        %v997 = vunpack.c.l.b16 %v921
        %v998 = vunpack.c.h.b16 %v921
        %v999 = vunpack.c.l.b16 %v922
        %v1000 = vunpack.c.h.b16 %v922
        %v1001 = vunpack.c.l.b16 %v923
        %v1002 = vunpack.c.h.b16 %v923
        %v1003 = vunpack.c.l.b16 %v924
        %v1004 = vunpack.c.h.b16 %v924
        %v1005 = vunpack.c.l.b16 %v925
        %v1006 = vunpack.c.h.b16 %v925
        %v1007 = vunpack.c.l.b16 %v926
        %v1008 = vunpack.c.h.b16 %v926
        %v1009 = vunpack.c.l.b16 %v927
        %v1010 = vunpack.c.h.b16 %v927
        %v1011 = vunpack.c.l.b16 %v928
        %v1012 = vunpack.c.h.b16 %v928
        %v1013 = vunpack.c.l.b16 %v929
        %v1014 = vunpack.c.h.b16 %v929
        %v1015 = vunpack.c.l.b16 %v930
        %v1016 = vunpack.c.h.b16 %v930
        %v1017 = vunpack.c.l.b16 %v931
        %v1018 = vunpack.c.h.b16 %v931
        %v1019 = vunpack.c.l.b16 %v932
        %v1020 = vunpack.c.h.b16 %v932
        %v1021 = vunpack.c.l.b16 %v933
        %v1022 = vunpack.c.h.b16 %v933
        %v1023 = vunpack.c.l.b16 %v934
        %v1024 = vunpack.c.h.b16 %v934
        %v1025 = vunpack.c.l.b16 %v935
        %v1026 = vunpack.c.h.b16 %v935
        %v1027 = vunpack.c.l.b16 %v936
        %v1028 = vunpack.c.h.b16 %v936
        %v1029 = vunpack.c.l.b16 %v937
        %v1030 = vunpack.c.h.b16 %v937
        %v1031 = vunpack.c.l.b16 %v938
        %v1032 = vunpack.c.h.b16 %v938
        %v1033 = vunpack.c.l.b16 %v939
        %v1034 = vunpack.c.h.b16 %v939
        %v1035 = vunpack.c.l.b16 %v940
        %v1036 = vunpack.c.h.b16 %v940
        %v1037 = vunpack.c.l.b16 %v941
        %v1038 = vunpack.c.h.b16 %v941
        %v1039 = vunpack.c.l.b16 %v942
        %v1040 = vunpack.c.h.b16 %v942
        %v1041 = vunpack.c.l.b16 %v943
        %v1042 = vunpack.c.h.b16 %v943
        %v1043 = vunpack.c.l.b16 %v944
        %v1044 = vunpack.c.h.b16 %v944
        %v1045 = vunpack.c.l.b16 %v945
        %v1046 = vunpack.c.h.b16 %v945
        %v1047 = vunpack.c.l.b16 %v946
        %v1048 = vunpack.c.h.b16 %v946
        %v1049 = vunpack.c.l.b16 %v947
        %v1050 = vunpack.c.h.b16 %v947
        %v1051 = vpack.c.b16 %v989, %v987
        %v1052 = vpack.c.b16 %v990, %v988
        %v1053 = vpack.c.b16 %v993, %v991
        %v1054 = vpack.c.b16 %v994, %v992
        %v1055 = vpack.c.b16 %v997, %v995
        %v1056 = vpack.c.b16 %v998, %v996
        %v1057 = vpack.c.b16 %v1001, %v999
        %v1058 = vpack.c.b16 %v1002, %v1000
        %v1059 = vpack.c.b16 %v1005, %v1003
        %v1060 = vpack.c.b16 %v1006, %v1004
        %v1061 = vpack.c.b16 %v1009, %v1007
        %v1062 = vpack.c.b16 %v1010, %v1008
        %v1063 = vpack.c.b16 %v1013, %v1011
        %v1064 = vpack.c.b16 %v1014, %v1012
        %v1065 = vpack.c.b16 %v1017, %v1015
        %v1066 = vpack.c.b16 %v1018, %v1016
        %v1067 = vpack.c.b16 %v1021, %v1019
        %v1068 = vpack.c.b16 %v1022, %v1020
        %v1069 = vpack.c.b16 %v1025, %v1023
        %v1070 = vpack.c.b16 %v1026, %v1024
        %v1071 = vpack.c.b16 %v1029, %v1027
        %v1072 = vpack.c.b16 %v1030, %v1028
        %v1073 = vpack.c.b16 %v1033, %v1031
        %v1074 = vpack.c.b16 %v1034, %v1032
        %v1075 = vpack.c.b16 %v1037, %v1035
        %v1076 = vpack.c.b16 %v1038, %v1036
        %v1077 = vpack.c.b16 %v1041, %v1039
        %v1078 = vpack.c.b16 %v1042, %v1040
        %v1079 = vpack.c.b16 %v1045, %v1043
        %v1080 = vpack.c.b16 %v1046, %v1044
        %v1081 = vpack.c.b16 %v1049, %v1047
        %v1082 = vpack.c.b16 %v1050, %v1048
        %1115 = vmatpush.bf16.msra.mxu0 %v1065
        %1116 = vmatpush.bf16.msra.mxu0 %v1063
        %1117 = vmatpush.bf16.msra.mxu0 %v1061
        %1118 = vmatpush.bf16.msra.mxu0 %v1059
        %1119 = vmatpush.bf16.msra.mxu0 %v1057
        %1120 = vmatpush.bf16.msra.mxu0 %v1055
        %1121 = vmatpush.bf16.msra.mxu0 %v1053
        %1122 = vmatpush.bf16.msra.mxu0 %v1051
        %1123 = vmatmul.bf16.gmra.mxu0 %v911
        %v1124 = vpop.f32.mrf.mxu0
        %v1125 = vadd.f32 %v951, %v1124
        %v1126 = vpop.f32.mrf.mxu0
        %v1127 = vadd.f32 %v951, %v1126
        %1128 = vmatmul.bf16.gmra.mxu0 %v913
        %v1129 = vpop.f32.mrf.mxu0
        %v1130 = vadd.f32 %v951, %v1129
        %v1131 = vpop.f32.mrf.mxu0
        %v1132 = vadd.f32 %v951, %v1131
        %1133 = vdwg.mxu0
        %1134 = vmatpush.bf16.msra.mxu0 %v1081
        %1135 = vmatpush.bf16.msra.mxu0 %v1079
        %1136 = vmatpush.bf16.msra.mxu0 %v1077
        %1137 = vmatpush.bf16.msra.mxu0 %v1075
        %1138 = vmatpush.bf16.msra.mxu0 %v1073
        %1139 = vmatpush.bf16.msra.mxu0 %v1071
        %1140 = vmatpush.bf16.msra.mxu0 %v1069
        %1141 = vmatpush.bf16.msra.mxu0 %v1067
        %1142 = vmatmul.bf16.gmra.mxu0 %v912
        %v1143 = vpop.f32.mrf.mxu0
        %v1144 = vadd.f32 %v1125, %v1143
        %v1145 = vpop.f32.mrf.mxu0
        %v1146 = vadd.f32 %v1127, %v1145
        %1147 = vmatmul.bf16.gmra.mxu0 %v914
        %v1148 = vpop.f32.mrf.mxu0
        %v1149 = vadd.f32 %v1130, %v1148
        %v1150 = vpop.f32.mrf.mxu0
        %v1151 = vadd.f32 %v1132, %v1150
        %1152 = vdwg.mxu0
        %1153 = vmatpush.bf16.msra.mxu0 %v1066
        %1154 = vmatpush.bf16.msra.mxu0 %v1064
        %1155 = vmatpush.bf16.msra.mxu0 %v1062
        %1156 = vmatpush.bf16.msra.mxu0 %v1060
        %1157 = vmatpush.bf16.msra.mxu0 %v1058
        %1158 = vmatpush.bf16.msra.mxu0 %v1056
        %1159 = vmatpush.bf16.msra.mxu0 %v1054
        %1160 = vmatpush.bf16.msra.mxu0 %v1052
        %1161 = vmatmul.bf16.gmra.mxu0 %v911
        %v1162 = vpop.f32.mrf.mxu0
        %v1163 = vadd.f32 %v952, %v1162
        %v1164 = vpop.f32.mrf.mxu0
        %v1165 = vadd.f32 %v952, %v1164
        %1166 = vmatmul.bf16.gmra.mxu0 %v913
        %v1167 = vpop.f32.mrf.mxu0
        %v1168 = vadd.f32 %v952, %v1167
        %v1169 = vpop.f32.mrf.mxu0
        %v1170 = vadd.f32 %v952, %v1169
        %1171 = vdwg.mxu0
        %1172 = vmatpush.bf16.msra.mxu0 %v1082
        %1173 = vmatpush.bf16.msra.mxu0 %v1080
        %1174 = vmatpush.bf16.msra.mxu0 %v1078
        %1175 = vmatpush.bf16.msra.mxu0 %v1076
        %1176 = vmatpush.bf16.msra.mxu0 %v1074
        %1177 = vmatpush.bf16.msra.mxu0 %v1072
        %1178 = vmatpush.bf16.msra.mxu0 %v1070
        %1179 = vmatpush.bf16.msra.mxu0 %v1068
        %1180 = vmatmul.bf16.gmra.mxu0 %v912
        %v1181 = vpop.f32.mrf.mxu0
        %v1182 = vadd.f32 %v1163, %v1181
        %v1183 = vpop.f32.mrf.mxu0
        %v1184 = vadd.f32 %v1165, %v1183
        %1185 = vmatmul.bf16.gmra.mxu0 %v914
        %v1186 = vpop.f32.mrf.mxu0
        %v1187 = vadd.f32 %v1168, %v1186
        %v1188 = vpop.f32.mrf.mxu0
        %v1189 = vadd.f32 %v1170, %v1188
        %1190 = vdwg.mxu0
        %v1191 = vmax.f32 %v1144, 0.0
        %v1192 = vmax.f32 %v1182, 0.0
        %v1193 = vmax.f32 %v1146, 0.0
        %v1194 = vmax.f32 %v1184, 0.0
        %v1195 = vmax.f32 %v1149, 0.0
        %v1196 = vmax.f32 %v1187, 0.0
        %v1197 = vmax.f32 %v1151, 0.0
        %v1198 = vmax.f32 %v1189, 0.0
        %v1199 = vpack.c.bf16 %v1193, %v1191
        %v1200 = vpack.c.bf16 %v1194, %v1192
        %v1201 = vpack.c.bf16 %v1197, %v1195
        %v1202 = vpack.c.bf16 %v1198, %v1196
        %s1203 = scalar_lea.vmem [#allocation4], 512
        %v1204 = vld [vmem:[%s1203] sm:$0xff]
        %v1205 = vld [vmem:[%s1203 + $0x8] sm:$0xff]
        %v1206 = vld [vmem:[%s1203 + $0x10] sm:$0xff]
        %v1207 = vld [vmem:[%s1203 + $0x18] sm:$0xff]
        %v1208 = vld [vmem:[%s1203 + $0x20] sm:$0xff]
        %v1209 = vld [vmem:[%s1203 + $0x28] sm:$0xff]
        %v1210 = vld [vmem:[%s1203 + $0x30] sm:$0xff]
        %v1211 = vld [vmem:[%s1203 + $0x38] sm:$0xff]
        %v1212 = vld [vmem:[%s1203 + $0x40] sm:$0xff]
        %v1213 = vld [vmem:[%s1203 + $0x48] sm:$0xff]
        %v1214 = vld [vmem:[%s1203 + $0x50] sm:$0xff]
        %v1215 = vld [vmem:[%s1203 + $0x58] sm:$0xff]
        %v1216 = vld [vmem:[%s1203 + $0x60] sm:$0xff]
        %v1217 = vld [vmem:[%s1203 + $0x68] sm:$0xff]
        %v1218 = vld [vmem:[%s1203 + $0x70] sm:$0xff]
        %v1219 = vld [vmem:[%s1203 + $0x78] sm:$0xff]
        %v1220 = vld [vmem:[%s1203 + $0x80] sm:$0xff]
        %v1221 = vld [vmem:[%s1203 + $0x88] sm:$0xff]
        %v1222 = vld [vmem:[%s1203 + $0x90] sm:$0xff]
        %v1223 = vld [vmem:[%s1203 + $0x98] sm:$0xff]
        %v1224 = vld [vmem:[%s1203 + $0xa0] sm:$0xff]
        %v1225 = vld [vmem:[%s1203 + $0xa8] sm:$0xff]
        %v1226 = vld [vmem:[%s1203 + $0xb0] sm:$0xff]
        %v1227 = vld [vmem:[%s1203 + $0xb8] sm:$0xff]
        %v1228 = vld [vmem:[%s1203 + $0xc0] sm:$0xff]
        %v1229 = vld [vmem:[%s1203 + $0xc8] sm:$0xff]
        %v1230 = vld [vmem:[%s1203 + $0xd0] sm:$0xff]
        %v1231 = vld [vmem:[%s1203 + $0xd8] sm:$0xff]
        %v1232 = vld [vmem:[%s1203 + $0xe0] sm:$0xff]
        %v1233 = vld [vmem:[%s1203 + $0xe8] sm:$0xff]
        %v1234 = vld [vmem:[%s1203 + $0xf0] sm:$0xff]
        %v1235 = vld [vmem:[%s1203 + $0xf8] sm:$0xff]
        %s1236 = scalar_lea.vmem %s4, 2
        %v1237 = vld [vmem:[%s1236] ss:$4 sm:$0x3]
        %v1239 = vperm.slane %v1237, 0
        %v1240 = vperm.slane %v1237, 1
        %v1275 = vunpack.c.l.b16 %v1204
        %v1276 = vunpack.c.h.b16 %v1204
        %v1277 = vunpack.c.l.b16 %v1205
        %v1278 = vunpack.c.h.b16 %v1205
        %v1279 = vunpack.c.l.b16 %v1206
        %v1280 = vunpack.c.h.b16 %v1206
        %v1281 = vunpack.c.l.b16 %v1207
        %v1282 = vunpack.c.h.b16 %v1207
        %v1283 = vunpack.c.l.b16 %v1208
        %v1284 = vunpack.c.h.b16 %v1208
        %v1285 = vunpack.c.l.b16 %v1209
        %v1286 = vunpack.c.h.b16 %v1209
        %v1287 = vunpack.c.l.b16 %v1210
        %v1288 = vunpack.c.h.b16 %v1210
        %v1289 = vunpack.c.l.b16 %v1211
        %v1290 = vunpack.c.h.b16 %v1211
        %v1291 = vunpack.c.l.b16 %v1212
        %v1292 = vunpack.c.h.b16 %v1212
        %v1293 = vunpack.c.l.b16 %v1213
        %v1294 = vunpack.c.h.b16 %v1213
        %v1295 = vunpack.c.l.b16 %v1214
        %v1296 = vunpack.c.h.b16 %v1214
        %v1297 = vunpack.c.l.b16 %v1215
        %v1298 = vunpack.c.h.b16 %v1215
        %v1299 = vunpack.c.l.b16 %v1216
        %v1300 = vunpack.c.h.b16 %v1216
        %v1301 = vunpack.c.l.b16 %v1217
        %v1302 = vunpack.c.h.b16 %v1217
        %v1303 = vunpack.c.l.b16 %v1218
        %v1304 = vunpack.c.h.b16 %v1218
        %v1305 = vunpack.c.l.b16 %v1219
        %v1306 = vunpack.c.h.b16 %v1219
        %v1307 = vunpack.c.l.b16 %v1220
        %v1308 = vunpack.c.h.b16 %v1220
        %v1309 = vunpack.c.l.b16 %v1221
        %v1310 = vunpack.c.h.b16 %v1221
        %v1311 = vunpack.c.l.b16 %v1222
        %v1312 = vunpack.c.h.b16 %v1222
        %v1313 = vunpack.c.l.b16 %v1223
        %v1314 = vunpack.c.h.b16 %v1223
        %v1315 = vunpack.c.l.b16 %v1224
        %v1316 = vunpack.c.h.b16 %v1224
        %v1317 = vunpack.c.l.b16 %v1225
        %v1318 = vunpack.c.h.b16 %v1225
        %v1319 = vunpack.c.l.b16 %v1226
        %v1320 = vunpack.c.h.b16 %v1226
        %v1321 = vunpack.c.l.b16 %v1227
        %v1322 = vunpack.c.h.b16 %v1227
        %v1323 = vunpack.c.l.b16 %v1228
        %v1324 = vunpack.c.h.b16 %v1228
        %v1325 = vunpack.c.l.b16 %v1229
        %v1326 = vunpack.c.h.b16 %v1229
        %v1327 = vunpack.c.l.b16 %v1230
        %v1328 = vunpack.c.h.b16 %v1230
        %v1329 = vunpack.c.l.b16 %v1231
        %v1330 = vunpack.c.h.b16 %v1231
        %v1331 = vunpack.c.l.b16 %v1232
        %v1332 = vunpack.c.h.b16 %v1232
        %v1333 = vunpack.c.l.b16 %v1233
        %v1334 = vunpack.c.h.b16 %v1233
        %v1335 = vunpack.c.l.b16 %v1234
        %v1336 = vunpack.c.h.b16 %v1234
        %v1337 = vunpack.c.l.b16 %v1235
        %v1338 = vunpack.c.h.b16 %v1235
        %v1339 = vpack.c.b16 %v1277, %v1275
        %v1340 = vpack.c.b16 %v1278, %v1276
        %v1341 = vpack.c.b16 %v1281, %v1279
        %v1342 = vpack.c.b16 %v1282, %v1280
        %v1343 = vpack.c.b16 %v1285, %v1283
        %v1344 = vpack.c.b16 %v1286, %v1284
        %v1345 = vpack.c.b16 %v1289, %v1287
        %v1346 = vpack.c.b16 %v1290, %v1288
        %v1347 = vpack.c.b16 %v1293, %v1291
        %v1348 = vpack.c.b16 %v1294, %v1292
        %v1349 = vpack.c.b16 %v1297, %v1295
        %v1350 = vpack.c.b16 %v1298, %v1296
        %v1351 = vpack.c.b16 %v1301, %v1299
        %v1352 = vpack.c.b16 %v1302, %v1300
        %v1353 = vpack.c.b16 %v1305, %v1303
        %v1354 = vpack.c.b16 %v1306, %v1304
        %v1355 = vpack.c.b16 %v1309, %v1307
        %v1356 = vpack.c.b16 %v1310, %v1308
        %v1357 = vpack.c.b16 %v1313, %v1311
        %v1358 = vpack.c.b16 %v1314, %v1312
        %v1359 = vpack.c.b16 %v1317, %v1315
        %v1360 = vpack.c.b16 %v1318, %v1316
        %v1361 = vpack.c.b16 %v1321, %v1319
        %v1362 = vpack.c.b16 %v1322, %v1320
        %v1363 = vpack.c.b16 %v1325, %v1323
        %v1364 = vpack.c.b16 %v1326, %v1324
        %v1365 = vpack.c.b16 %v1329, %v1327
        %v1366 = vpack.c.b16 %v1330, %v1328
        %v1367 = vpack.c.b16 %v1333, %v1331
        %v1368 = vpack.c.b16 %v1334, %v1332
        %v1369 = vpack.c.b16 %v1337, %v1335
        %v1370 = vpack.c.b16 %v1338, %v1336
        %1403 = vmatpush.bf16.msra.mxu0 %v1353
        %1404 = vmatpush.bf16.msra.mxu0 %v1351
        %1405 = vmatpush.bf16.msra.mxu0 %v1349
        %1406 = vmatpush.bf16.msra.mxu0 %v1347
        %1407 = vmatpush.bf16.msra.mxu0 %v1345
        %1408 = vmatpush.bf16.msra.mxu0 %v1343
        %1409 = vmatpush.bf16.msra.mxu0 %v1341
        %1410 = vmatpush.bf16.msra.mxu0 %v1339
        %1411 = vmatmul.bf16.gmra.mxu0 %v1199
        %v1412 = vpop.f32.mrf.mxu0
        %v1413 = vadd.f32 %v1239, %v1412
        %v1414 = vpop.f32.mrf.mxu0
        %v1415 = vadd.f32 %v1239, %v1414
        %1416 = vmatmul.bf16.gmra.mxu0 %v1201
        %v1417 = vpop.f32.mrf.mxu0
        %v1418 = vadd.f32 %v1239, %v1417
        %v1419 = vpop.f32.mrf.mxu0
        %v1420 = vadd.f32 %v1239, %v1419
        %1421 = vdwg.mxu0
        %1422 = vmatpush.bf16.msra.mxu0 %v1369
        %1423 = vmatpush.bf16.msra.mxu0 %v1367
        %1424 = vmatpush.bf16.msra.mxu0 %v1365
        %1425 = vmatpush.bf16.msra.mxu0 %v1363
        %1426 = vmatpush.bf16.msra.mxu0 %v1361
        %1427 = vmatpush.bf16.msra.mxu0 %v1359
        %1428 = vmatpush.bf16.msra.mxu0 %v1357
        %1429 = vmatpush.bf16.msra.mxu0 %v1355
        %1430 = vmatmul.bf16.gmra.mxu0 %v1200
        %v1431 = vpop.f32.mrf.mxu0
        %v1432 = vadd.f32 %v1413, %v1431
        %v1433 = vpop.f32.mrf.mxu0
        %v1434 = vadd.f32 %v1415, %v1433
        %1435 = vmatmul.bf16.gmra.mxu0 %v1202
        %v1436 = vpop.f32.mrf.mxu0
        %v1437 = vadd.f32 %v1418, %v1436
        %v1438 = vpop.f32.mrf.mxu0
        %v1439 = vadd.f32 %v1420, %v1438
        %1440 = vdwg.mxu0
        %1441 = vmatpush.bf16.msra.mxu0 %v1354
        %1442 = vmatpush.bf16.msra.mxu0 %v1352
        %1443 = vmatpush.bf16.msra.mxu0 %v1350
        %1444 = vmatpush.bf16.msra.mxu0 %v1348
        %1445 = vmatpush.bf16.msra.mxu0 %v1346
        %1446 = vmatpush.bf16.msra.mxu0 %v1344
        %1447 = vmatpush.bf16.msra.mxu0 %v1342
        %1448 = vmatpush.bf16.msra.mxu0 %v1340
        %1449 = vmatmul.bf16.gmra.mxu0 %v1199
        %v1450 = vpop.f32.mrf.mxu0
        %v1451 = vadd.f32 %v1240, %v1450
        %v1452 = vpop.f32.mrf.mxu0
        %v1453 = vadd.f32 %v1240, %v1452
        %1454 = vmatmul.bf16.gmra.mxu0 %v1201
        %v1455 = vpop.f32.mrf.mxu0
        %v1456 = vadd.f32 %v1240, %v1455
        %v1457 = vpop.f32.mrf.mxu0
        %v1458 = vadd.f32 %v1240, %v1457
        %1459 = vdwg.mxu0
        %1460 = vmatpush.bf16.msra.mxu0 %v1370
        %1461 = vmatpush.bf16.msra.mxu0 %v1368
        %1462 = vmatpush.bf16.msra.mxu0 %v1366
        %1463 = vmatpush.bf16.msra.mxu0 %v1364
        %1464 = vmatpush.bf16.msra.mxu0 %v1362
        %1465 = vmatpush.bf16.msra.mxu0 %v1360
        %1466 = vmatpush.bf16.msra.mxu0 %v1358
        %1467 = vmatpush.bf16.msra.mxu0 %v1356
        %1468 = vmatmul.bf16.gmra.mxu0 %v1200
        %v1469 = vpop.f32.mrf.mxu0
        %v1470 = vadd.f32 %v1451, %v1469
        %v1471 = vpop.f32.mrf.mxu0
        %v1472 = vadd.f32 %v1453, %v1471
        %1473 = vmatmul.bf16.gmra.mxu0 %v1202
        %v1474 = vpop.f32.mrf.mxu0
        %v1475 = vadd.f32 %v1456, %v1474
        %v1476 = vpop.f32.mrf.mxu0
        %v1477 = vadd.f32 %v1458, %v1476
        %1478 = vdwg.mxu0
        %v1479 = vmax.f32 %v1432, 0.0
        %v1480 = vmax.f32 %v1470, 0.0
        %v1481 = vmax.f32 %v1434, 0.0
        %v1482 = vmax.f32 %v1472, 0.0
        %v1483 = vmax.f32 %v1437, 0.0
        %v1484 = vmax.f32 %v1475, 0.0
        %v1485 = vmax.f32 %v1439, 0.0
        %v1486 = vmax.f32 %v1477, 0.0
        %v1487 = vpack.c.bf16 %v1481, %v1479
        %v1488 = vpack.c.bf16 %v1482, %v1480
        %v1489 = vpack.c.bf16 %v1485, %v1483
        %v1490 = vpack.c.bf16 %v1486, %v1484
        %v1491 = vld [vmem:[%s5] sm:$0xf]
        %v1492 = vld [vmem:[%s5 + $0x4] sm:$0xf]
        %v1493 = vld [vmem:[%s5 + $0x8] sm:$0xf]
        %v1494 = vld [vmem:[%s5 + $0xc] sm:$0xf]
        %v1495 = vld [vmem:[%s5 + $0x10] sm:$0xf]
        %v1496 = vld [vmem:[%s5 + $0x14] sm:$0xf]
        %v1497 = vld [vmem:[%s5 + $0x18] sm:$0xf]
        %v1498 = vld [vmem:[%s5 + $0x1c] sm:$0xf]
        %v1499 = vld [vmem:[%s5 + $0x20] sm:$0xf]
        %v1500 = vld [vmem:[%s5 + $0x24] sm:$0xf]
        %v1501 = vld [vmem:[%s5 + $0x28] sm:$0xf]
        %v1502 = vld [vmem:[%s5 + $0x2c] sm:$0xf]
        %v1503 = vld [vmem:[%s5 + $0x30] sm:$0xf]
        %v1504 = vld [vmem:[%s5 + $0x34] sm:$0xf]
        %v1505 = vld [vmem:[%s5 + $0x38] sm:$0xf]
        %v1506 = vld [vmem:[%s5 + $0x3c] sm:$0xf]
        %v1507 = vld [vmem:[%s5 + $0x40] sm:$0xf]
        %v1508 = vld [vmem:[%s5 + $0x44] sm:$0xf]
        %v1509 = vld [vmem:[%s5 + $0x48] sm:$0xf]
        %v1510 = vld [vmem:[%s5 + $0x4c] sm:$0xf]
        %v1511 = vld [vmem:[%s5 + $0x50] sm:$0xf]
        %v1512 = vld [vmem:[%s5 + $0x54] sm:$0xf]
        %v1513 = vld [vmem:[%s5 + $0x58] sm:$0xf]
        %v1514 = vld [vmem:[%s5 + $0x5c] sm:$0xf]
        %v1515 = vld [vmem:[%s5 + $0x60] sm:$0xf]
        %v1516 = vld [vmem:[%s5 + $0x64] sm:$0xf]
        %v1517 = vld [vmem:[%s5 + $0x68] sm:$0xf]
        %v1518 = vld [vmem:[%s5 + $0x6c] sm:$0xf]
        %v1519 = vld [vmem:[%s5 + $0x70] sm:$0xf]
        %v1520 = vld [vmem:[%s5 + $0x74] sm:$0xf]
        %v1521 = vld [vmem:[%s5 + $0x78] sm:$0xf]
        %v1522 = vld [vmem:[%s5 + $0x7c] sm:$0xf]
        %v1523 = vld [vmem:[%s6] sm:$0x1]
        %v1525 = vperm.slane %v1523, 0
        %v1559 = vunpack.c.l.b16 %v1491
        %v1560 = vunpack.c.l.b16 %v1492
        %v1561 = vunpack.c.l.b16 %v1493
        %v1562 = vunpack.c.l.b16 %v1494
        %v1563 = vunpack.c.l.b16 %v1495
        %v1564 = vunpack.c.l.b16 %v1496
        %v1565 = vunpack.c.l.b16 %v1497
        %v1566 = vunpack.c.l.b16 %v1498
        %v1567 = vunpack.c.l.b16 %v1499
        %v1568 = vunpack.c.l.b16 %v1500
        %v1569 = vunpack.c.l.b16 %v1501
        %v1570 = vunpack.c.l.b16 %v1502
        %v1571 = vunpack.c.l.b16 %v1503
        %v1572 = vunpack.c.l.b16 %v1504
        %v1573 = vunpack.c.l.b16 %v1505
        %v1574 = vunpack.c.l.b16 %v1506
        %v1575 = vunpack.c.l.b16 %v1507
        %v1576 = vunpack.c.l.b16 %v1508
        %v1577 = vunpack.c.l.b16 %v1509
        %v1578 = vunpack.c.l.b16 %v1510
        %v1579 = vunpack.c.l.b16 %v1511
        %v1580 = vunpack.c.l.b16 %v1512
        %v1581 = vunpack.c.l.b16 %v1513
        %v1582 = vunpack.c.l.b16 %v1514
        %v1583 = vunpack.c.l.b16 %v1515
        %v1584 = vunpack.c.l.b16 %v1516
        %v1585 = vunpack.c.l.b16 %v1517
        %v1586 = vunpack.c.l.b16 %v1518
        %v1587 = vunpack.c.l.b16 %v1519
        %v1588 = vunpack.c.l.b16 %v1520
        %v1589 = vunpack.c.l.b16 %v1521
        %v1590 = vunpack.c.l.b16 %v1522
        %v1591 = vpack.c.b16 %v1560, %v1559
        %v1592 = vpack.c.b16 %v1562, %v1561
        %v1593 = vpack.c.b16 %v1564, %v1563
        %v1594 = vpack.c.b16 %v1566, %v1565
        %v1595 = vpack.c.b16 %v1568, %v1567
        %v1596 = vpack.c.b16 %v1570, %v1569
        %v1597 = vpack.c.b16 %v1572, %v1571
        %v1598 = vpack.c.b16 %v1574, %v1573
        %v1599 = vpack.c.b16 %v1576, %v1575
        %v1600 = vpack.c.b16 %v1578, %v1577
        %v1601 = vpack.c.b16 %v1580, %v1579
        %v1602 = vpack.c.b16 %v1582, %v1581
        %v1603 = vpack.c.b16 %v1584, %v1583
        %v1604 = vpack.c.b16 %v1586, %v1585
        %v1605 = vpack.c.b16 %v1588, %v1587
        %v1606 = vpack.c.b16 %v1590, %v1589
        %1623 = vmatpush.bf16.msra.mxu0 %v1598
        %1624 = vmatpush.bf16.msra.mxu0 %v1597
        %1625 = vmatpush.bf16.msra.mxu0 %v1596
        %1626 = vmatpush.bf16.msra.mxu0 %v1595
        %1627 = vmatpush.bf16.msra.mxu0 %v1594
        %1628 = vmatpush.bf16.msra.mxu0 %v1593
        %1629 = vmatpush.bf16.msra.mxu0 %v1592
        %1630 = vmatpush.bf16.msra.mxu0 %v1591
        %1631 = vmatmul.bf16.gmra.mxu0 %v1487
        %v1632 = vpop.f32.mrf.mxu0
        %v1633 = vadd.f32 %v1525, %v1632
        %v1634 = vpop.f32.mrf.mxu0
        %v1635 = vadd.f32 %v1525, %v1634
        %1636 = vmatmul.bf16.gmra.mxu0 %v1489
        %v1637 = vpop.f32.mrf.mxu0
        %v1638 = vadd.f32 %v1525, %v1637
        %v1639 = vpop.f32.mrf.mxu0
        %v1640 = vadd.f32 %v1525, %v1639
        %1641 = vdwg.mxu0
        %1642 = vmatpush.bf16.msra.mxu0 %v1606
        %1643 = vmatpush.bf16.msra.mxu0 %v1605
        %1644 = vmatpush.bf16.msra.mxu0 %v1604
        %1645 = vmatpush.bf16.msra.mxu0 %v1603
        %1646 = vmatpush.bf16.msra.mxu0 %v1602
        %1647 = vmatpush.bf16.msra.mxu0 %v1601
        %1648 = vmatpush.bf16.msra.mxu0 %v1600
        %1649 = vmatpush.bf16.msra.mxu0 %v1599
        %1650 = vmatmul.bf16.gmra.mxu0 %v1488
        %v1651 = vpop.f32.mrf.mxu0
        %v1652 = vadd.f32 %v1633, %v1651
        %v1653 = vpop.f32.mrf.mxu0
        %v1654 = vadd.f32 %v1635, %v1653
        %1655 = vmatmul.bf16.gmra.mxu0 %v1490
        %v1656 = vpop.f32.mrf.mxu0
        %v1657 = vadd.f32 %v1638, %v1656
        %v1658 = vpop.f32.mrf.mxu0
        %v1659 = vadd.f32 %v1640, %v1658
        %1660 = vdwg.mxu0
        %v1661 = vsub.f32 0.0, %v1652
        %v1662 = vsub.f32 0.0, %v1654
        %v1663 = vsub.f32 0.0, %v1657
        %v1664 = vsub.f32 0.0, %v1659
        %v1665 = vmul.f32 %v1661, 1.442695
        %v1666 = vpow.pop %v1665
        %v1667 = vmul.f32 %v1662, 1.442695
        %v1668 = vpow.pop %v1667
        %v1669 = vmul.f32 %v1663, 1.442695
        %v1670 = vpow.pop %v1669
        %v1671 = vmul.f32 %v1664, 1.442695
        %v1672 = vpow.pop %v1671
        %v1673 = vadd.f32 %v1666, 1.0
        %v1674 = vadd.f32 %v1668, 1.0
        %v1675 = vadd.f32 %v1670, 1.0
        %v1676 = vadd.f32 %v1672, 1.0
        %v1677 = vrcp.pop %v1673
        %v1678 = vrcp.pop %v1674
        %v1679 = vrcp.pop %v1675
        %v1680 = vrcp.pop %v1676
        %1681 = vst [vmem:[%s317] sm:$0xff] %v1677
        %1682 = vst [vmem:[%s317 + $0x8] sm:$0xff] %v1678
        %1683 = vst [vmem:[%s317 + $0x10] sm:$0xff] %v1679
        %1684 = vst [vmem:[%s317 + $0x18] sm:$0xff] %v1680
        %s1685 = smul.u32 4, %s20
        %p1686 = scmp.lt.s32.totalorder %s1685, 7
        %s1687 = scalar_select %p1686, %s1685, 7
        %s1688 = smul.addr %s1687, 8
        %s1689 = scalar_lea.vmem %s7, %s1688
        // Predicated region
        $region57: #{basic_mlp_forward.1} parent=47 // pred_check
          %p1690 = pneg %p190
        $region58: #{basic_mlp_forward.1} parent=47 // pred_check_branch
          %1692 = sbr.rel (%p1690) target = $region60
        $region59: #{basic_mlp_forward.1} parent=47 // pred_region
          %s1693 = smul.u32 4, %s20
        $region60: #{basic_mlp_forward.1} parent=47 // pred_fallthru
          _
      $region48: #{basic_mlp_forward.1} parent=5 // pred_fallthru
        _
      %p1694 = scmp.le.s32.totalorder 2, %s15
      // Predicated region
      $region61: #{basic_mlp_forward.1} parent=5 // pred_check
        %p1695 = pneg %p1694
      $region62: #{basic_mlp_forward.1} parent=5 // pred_check_branch
        %1697 = sbr.rel (%p1695) target = $region64
      $region63: #{basic_mlp_forward.1} parent=5 // pred_region
        %s1698 = ssub.s32 %s15, 2
        // Predicated region
        $region65: #{basic_mlp_forward.1} parent=63 // pred_check
          %p1699 = pneg %p196
        $region66: #{basic_mlp_forward.1} parent=63 // pred_check_branch
          %1701 = sbr.rel (%p1699) target = $region68
        $region67: #{basic_mlp_forward.1} parent=63 // pred_region
          %s1702 = smul.u32 4, %s21
          %p1703 = scmp.lt.s32.totalorder %s1702, 7
          %s1704 = scalar_select %p1703, %s1702, 7
          %s1705 = smul.addr %s1704, 8
          %s1706 = scalar_lea.vmem %s7, %s1705
        $region68: #{basic_mlp_forward.1} parent=63 // pred_fallthru
          _
      $region64: #{basic_mlp_forward.1} parent=5 // pred_fallthru
        _
    $region6: #{basic_mlp_forward.1} parent=1 // loop_footer
      %s19 = sadd.s32 1, %s15
    $region7: #{basic_mlp_forward.1} parent=1 // loop_footer_branch
      %14 = sbr.rel target = $region3
    $region8: #{basic_mlp_forward.1} parent=1 // loop_exit
      _
    %1707 = vsyncpa [#allocation3], 1
    %s1708 = scalar_lea.sflag [#allocation3], 1
    %1709 = vsyncpa %s1708, 1
    %1710 = vsyncpa [#allocation5], 1

</llo_original>
